<compile_context>
chip_gen: v7x
topology: tpu7x:2x2x1
jax: 0.10.0
libtpu: 0.0.40
codegen_flags: <defaults>
</compile_context>

<pallas_src>
import math

import numpy as np
import jax
import jax.numpy as jnp
from jax.experimental import pallas as pl
from jax.experimental.pallas import tpu as pltpu

# ----------------------------- configuration --------------------------------
N_NODES = 16
N_EDGES = 128
C_IN = 8                       # irreps_in  = "8x0e"
C_SH = 4                       # irreps_sh  = "4x0e"
C_OUT = 16                     # irreps_out = "16x0e"
R0, R1 = 16, 64                # radial_neurons = [16, 64]
P_DIM = C_IN * C_SH            # 32 outer-product entries per edge
W_NUMEL = C_IN * C_SH * C_OUT  # tp.weight_numel = 512
NUM_NEIGHBORS = float(N_EDGES) / float(N_NODES)


def _silu_norm_const() -> float:
    """e3nn normalize2mom constant for SiLU: 1/sqrt(E[silu(z)^2]), z~N(0,1)."""
    z = np.linspace(-12.0, 12.0, 240001)
    pdf = np.exp(-0.5 * z * z) / np.sqrt(2.0 * np.pi)
    s = z / (1.0 + np.exp(-z))
    y = s * s * pdf
    integral = float(np.sum(0.5 * (y[1:] + y[:-1]) * np.diff(z)))
    return float(1.0 / np.sqrt(integral))


SILU_NORM = _silu_norm_const()

# Folded scalar normalizations: MLP output layer 1/sqrt(R1), tensor-product
# path norm 1/sqrt(C_IN*C_SH), convolution norm 1/sqrt(num_neighbors).
OUT_SCALE = 1.0 / math.sqrt(R1 * C_IN * C_SH * NUM_NEIGHBORS)


# ------------------------- one-time constant setup ---------------------------
def tp_constants():
    """Constant expand/reduce matrices for the scalar-irreps tensor product.

    Built once with numpy (they become baked XLA constants, DMA'd into VMEM in
    the kernel prologue).  Flattened weight index j = (c*C_SH + s)*C_OUT + o
    and outer-product index p = c*C_SH + s.
    """
    p = np.arange(P_DIM)
    j = np.arange(W_NUMEL)
    ex_x32 = (p[None, :] // C_SH ==
              np.arange(C_IN)[:, None]).astype(np.float32)      # (C_IN, 32)
    ex_sh32 = (p[None, :] % C_SH ==
               np.arange(C_SH)[:, None]).astype(np.float32)     # (C_SH, 32)
    expand_g = (j[None, :] // C_OUT ==
                p[:, None]).astype(np.float32)                  # (32, 512)
    reduce_scaled = ((j[:, None] % C_OUT) ==
                     np.arange(C_OUT)[None, :]).astype(np.float32) * OUT_SCALE
    return (jnp.asarray(ex_x32), jnp.asarray(ex_sh32),
            jnp.asarray(expand_g), jnp.asarray(reduce_scaled))   # last: (512,16)


def prepare_params(w1, w2):
    """One-time parameter folding (done at setup time, NOT per forward call):
    1/sqrt(R0) into w1, the normalized-SiLU constant into w2 (linear)."""
    return w1 * (1.0 / math.sqrt(R0)), w2 * SILU_NORM


def prepare_edge_topology(edge_index):
    """One-time (per graph topology) gather/scatter one-hot matrices (f32)."""
    src = edge_index[0].astype(jnp.int32)
    dst = edge_index[1].astype(jnp.int32)
    onehot_src = (src[:, None] ==
                  jnp.arange(N_NODES)[None, :]).astype(jnp.float32)  # (E, N)
    onehot_dst = (dst[None, :] ==
                  jnp.arange(N_NODES)[:, None]).astype(jnp.float32)  # (N, E)
    return onehot_src, onehot_dst


# ------------------------------- kernel --------------------------------------
def e3nn_conv_kernel(x_ref, sh_ref, emb_ref, w1_ref, w2_ref,
                     oh_src_ref, oh_dst_ref, ex_x_ref, ex_sh_ref,
                     expand_ref, reduce_ref, out_ref):
    # ---- radial MLP (e3nn FullyConnectedNet).  1/sqrt(R0) is pre-folded into
    #      w1, SILU_NORM into w2, and 1/sqrt(R1) into reduce_ref.
    h = jax.nn.silu(jnp.dot(emb_ref[...], w1_ref[...],
                            preferred_element_type=jnp.float32))      # (E, R1)
    w = jnp.dot(h, w2_ref[...],
                preferred_element_type=jnp.float32)                   # (E, 512)

    # ---- gather x[src] via one-hot matmul: (E, N) @ (N, C_IN)
    x_src = jnp.dot(oh_src_ref[...], x_ref[...],
                    preferred_element_type=jnp.float32)               # (E, 8)

    # ---- per-edge outer product g[e, c*C_SH+s] = x_src[e,c] * sh[e,s]
    g = (jnp.dot(x_src, ex_x_ref[...], preferred_element_type=jnp.float32)
         * jnp.dot(sh_ref[...], ex_sh_ref[...],
                   preferred_element_type=jnp.float32))               # (E, 32)

    # ---- expand once to the flattened TP-weight index and apply per-edge
    #      weights (single wide VPU multiply).
    wprod = w * jnp.dot(g, expand_ref[...],
                        preferred_element_type=jnp.float32)           # (E, 512)

    # ---- scatter-add onto destination nodes first (lane-dense 512-wide
    #      result), then reduce the flattened index down to C_OUT.
    agg = jnp.dot(oh_dst_ref[...], wprod,
                  preferred_element_type=jnp.float32)                 # (N, 512)
    out_ref[...] = jnp.dot(agg, reduce_ref[...],
                           preferred_element_type=jnp.float32)        # (N, 16)


# ------------------------------- wrapper --------------------------------------
def e3nn_basic_conv(x, edge_attr, edge_len_embbed, w1_scaled, w2_scaled,
                    onehot_src, onehot_dst, ex_x32, ex_sh32,
                    expand_g, reduce_scaled):
    def full(shape):
        return pl.BlockSpec(shape, lambda i: (0,) * len(shape))

    return pl.pallas_call(
        e3nn_conv_kernel,
        out_shape=jax.ShapeDtypeStruct((N_NODES, C_OUT), jnp.float32),
        grid_spec=pltpu.PrefetchScalarGridSpec(
            num_scalar_prefetch=0,
            grid=(1,),                                   # everything fits VMEM
            in_specs=[
                full((N_NODES, C_IN)),       # x
                full((N_EDGES, C_SH)),       # edge_attr (spherical harmonics)
                full((N_EDGES, R0)),         # edge_len_embbed
                full((R0, R1)),              # MLP W1 (1/sqrt(R0) folded)
                full((R1, W_NUMEL)),         # MLP W2 (SILU_NORM folded)
                full((N_EDGES, N_NODES)),    # gather one-hot
                full((N_NODES, N_EDGES)),    # scatter one-hot
                full((C_IN, P_DIM)),         # x -> outer-product expand
                full((C_SH, P_DIM)),         # sh -> outer-product expand
                full((P_DIM, W_NUMEL)),      # outer product -> flat weight idx
                full((W_NUMEL, C_OUT)),      # reduce (+ all scalar norms)
            ],
            out_specs=full((N_NODES, C_OUT)),
        ),
        compiler_params=pltpu.CompilerParams(
            dimension_semantics=("arbitrary",)),
    )(x, edge_attr, edge_len_embbed, w1_scaled, w2_scaled,
      onehot_src, onehot_dst, ex_x32, ex_sh32, expand_g, reduce_scaled)


# ---------------------------- pure-JAX reference ------------------------------
def reference_forward(x, edge_index, edge_attr, emb, w1, w2):
    src, dst = edge_index[0], edge_index[1]
    h = jax.nn.silu(jnp.dot(emb, w1, precision="highest")
                    / math.sqrt(R0)) * SILU_NORM
    w = jnp.dot(h, w2, precision="highest") / math.sqrt(R1)
    xs = x[src]                                                      # (E, C_IN)
    wr = w.reshape(N_EDGES, C_IN, C_SH, C_OUT)
    summand = jnp.einsum("ec,es,ecso->eo", xs, edge_attr, wr,
                         precision="highest") / math.sqrt(C_IN * C_SH)
    out = jnp.zeros((N_NODES, C_OUT), jnp.float32).at[dst].add(summand)
    return out / math.sqrt(NUM_NEIGHBORS)


# --------------------------------- main ---------------------------------------
if __name__ == "__main__":
    key = jax.random.PRNGKey(0)
    k = jax.random.split(key, 6)

    x = jax.random.normal(k[0], (N_NODES, C_IN), jnp.float32)
    edge_index = jax.random.randint(k[1], (2, N_EDGES), 0, N_NODES, jnp.int32)
    edge_attr = jax.random.normal(k[2], (N_EDGES, C_SH), jnp.float32)
    edge_len_embbed = jax.random.normal(k[3], (N_EDGES, R0), jnp.float32)

    # deterministic parameter init (e3nn initializes MLP weights ~ N(0, 1))
    w1 = jax.random.normal(k[4], (R0, R1), jnp.float32)
    w2 = jax.random.normal(k[5], (R1, W_NUMEL), jnp.float32)

    # ---- one-time setup: constant folding + topology one-hots (not per call)
    w1_s, w2_s = prepare_params(w1, w2)
    onehot_src, onehot_dst = prepare_edge_topology(edge_index)
    ex_x32, ex_sh32, expand_g, reduce_scaled = tp_constants()

    out = e3nn_basic_conv(x, edge_attr, edge_len_embbed, w1_s, w2_s,
                          onehot_src, onehot_dst, ex_x32, ex_sh32,
                          expand_g, reduce_scaled)
    out = jax.block_until_ready(out)

    ref = jax.block_until_ready(
        reference_forward(x, edge_index, edge_attr, edge_len_embbed, w1, w2))

    if not jnp.allclose(out, ref, atol=2e-3, rtol=2e-3):
        max_diff = float(jnp.max(jnp.abs(out - ref)))
        raise SystemExit(f"mismatch vs reference, max |diff| = {max_diff}")

    print("KERNEL_OK")
</pallas_src>

<mosaic_0001>
module attributes {stable_mosaic.version = 11 : i64} {
  func.func @e3nn_conv_kernel(%arg0: i32, %arg1: memref<16x8xf32, #tpu.memory_space<vmem>>, %arg2: memref<128x4xf32, #tpu.memory_space<vmem>>, %arg3: memref<128x16xf32, #tpu.memory_space<vmem>>, %arg4: memref<16x64xf32, #tpu.memory_space<vmem>>, %arg5: memref<64x512xf32, #tpu.memory_space<vmem>>, %arg6: memref<128x16xf32, #tpu.memory_space<vmem>>, %arg7: memref<16x128xf32, #tpu.memory_space<vmem>>, %arg8: memref<8x32xf32, #tpu.memory_space<vmem>>, %arg9: memref<4x32xf32, #tpu.memory_space<vmem>>, %arg10: memref<32x512xf32, #tpu.memory_space<vmem>>, %arg11: memref<512x16xf32, #tpu.memory_space<vmem>>, %arg12: memref<16x16xf32, #tpu.memory_space<vmem>>) attributes {dimension_semantics = [#tpu.dimension_semantics<arbitrary>], iteration_bounds = array<i64: 1>, scalar_prefetch = 0 : i64, scratch_operands = 0 : i64, tpu.core_type = #tpu.core_type<tc>, window_params = [{pipeline_mode = #tpu.pipeline_mode<synchronous>, transform_indices = @transform_0, window_bounds = array<i64: 16, 8>}, {pipeline_mode = #tpu.pipeline_mode<synchronous>, transform_indices = @transform_1, window_bounds = array<i64: 128, 4>}, {pipeline_mode = #tpu.pipeline_mode<synchronous>, transform_indices = @transform_2, window_bounds = array<i64: 128, 16>}, {pipeline_mode = #tpu.pipeline_mode<synchronous>, transform_indices = @transform_3, window_bounds = array<i64: 16, 64>}, {pipeline_mode = #tpu.pipeline_mode<synchronous>, transform_indices = @transform_4, window_bounds = array<i64: 64, 512>}, {pipeline_mode = #tpu.pipeline_mode<synchronous>, transform_indices = @transform_5, window_bounds = array<i64: 128, 16>}, {pipeline_mode = #tpu.pipeline_mode<synchronous>, transform_indices = @transform_6, window_bounds = array<i64: 16, 128>}, {pipeline_mode = #tpu.pipeline_mode<synchronous>, transform_indices = @transform_7, window_bounds = array<i64: 8, 32>}, {pipeline_mode = #tpu.pipeline_mode<synchronous>, transform_indices = @transform_8, window_bounds = array<i64: 4, 32>}, {pipeline_mode = #tpu.pipeline_mode<synchronous>, transform_indices = @transform_9, window_bounds = array<i64: 32, 512>}, {pipeline_mode = #tpu.pipeline_mode<synchronous>, transform_indices = @transform_10, window_bounds = array<i64: 512, 16>}, {pipeline_mode = #tpu.pipeline_mode<synchronous>, transform_indices = @transform_11, window_bounds = array<i64: 16, 16>}]} {
    %c0 = arith.constant 0 : index
    %c0_0 = arith.constant 0 : index
    %0 = vector.load %arg3[%c0, %c0_0] : memref<128x16xf32, #tpu.memory_space<vmem>>, vector<128x16xf32>
    %c0_1 = arith.constant 0 : index
    %c0_2 = arith.constant 0 : index
    %1 = vector.load %arg4[%c0_1, %c0_2] : memref<16x64xf32, #tpu.memory_space<vmem>>, vector<16x64xf32>
    %cst = arith.constant dense<0.000000e+00> : vector<128x64xf32>
    %2 = tpu.matmul %0, %1, %cst {dimension_numbers = #tpu.dot_dimension_numbers<[1], [0], [0], [1], [0, 0, 1, 1], [], []>} : vector<128x16xf32>, vector<16x64xf32>, vector<128x64xf32> -> vector<128x64xf32>
    %3 = arith.negf %2 : vector<128x64xf32>
    %4 = math.exp %3 : vector<128x64xf32>
    %cst_3 = arith.constant 1.000000e+00 : f32
    %5 = vector.broadcast %cst_3 : f32 to vector<128x64xf32>
    %6 = arith.addf %5, %4 : vector<128x64xf32>
    %7 = arith.divf %5, %6 : vector<128x64xf32>
    %8 = arith.mulf %2, %7 : vector<128x64xf32>
    %c0_4 = arith.constant 0 : index
    %c0_5 = arith.constant 0 : index
    %9 = vector.load %arg5[%c0_4, %c0_5] : memref<64x512xf32, #tpu.memory_space<vmem>>, vector<64x512xf32>
    %cst_6 = arith.constant dense<0.000000e+00> : vector<128x512xf32>
    %10 = tpu.matmul %8, %9, %cst_6 {dimension_numbers = #tpu.dot_dimension_numbers<[1], [0], [0], [1], [0, 0, 1, 1], [], []>} : vector<128x64xf32>, vector<64x512xf32>, vector<128x512xf32> -> vector<128x512xf32>
    %c0_7 = arith.constant 0 : index
    %c0_8 = arith.constant 0 : index
    %11 = vector.load %arg6[%c0_7, %c0_8] : memref<128x16xf32, #tpu.memory_space<vmem>>, vector<128x16xf32>
    %c0_9 = arith.constant 0 : index
    %c0_10 = arith.constant 0 : index
    %12 = vector.load %arg1[%c0_9, %c0_10] : memref<16x8xf32, #tpu.memory_space<vmem>>, vector<16x8xf32>
    %cst_11 = arith.constant dense<0.000000e+00> : vector<128x8xf32>
    %13 = tpu.matmul %11, %12, %cst_11 {dimension_numbers = #tpu.dot_dimension_numbers<[1], [0], [0], [1], [0, 0, 1, 1], [], []>} : vector<128x16xf32>, vector<16x8xf32>, vector<128x8xf32> -> vector<128x8xf32>
    %c0_12 = arith.constant 0 : index
    %c0_13 = arith.constant 0 : index
    %14 = vector.load %arg8[%c0_12, %c0_13] : memref<8x32xf32, #tpu.memory_space<vmem>>, vector<8x32xf32>
    %cst_14 = arith.constant dense<0.000000e+00> : vector<128x32xf32>
    %15 = tpu.matmul %13, %14, %cst_14 {dimension_numbers = #tpu.dot_dimension_numbers<[1], [0], [0], [1], [0, 0, 1, 1], [], []>} : vector<128x8xf32>, vector<8x32xf32>, vector<128x32xf32> -> vector<128x32xf32>
    %c0_15 = arith.constant 0 : index
    %c0_16 = arith.constant 0 : index
    %16 = vector.load %arg2[%c0_15, %c0_16] : memref<128x4xf32, #tpu.memory_space<vmem>>, vector<128x4xf32>
    %c0_17 = arith.constant 0 : index
    %c0_18 = arith.constant 0 : index
    %17 = vector.load %arg9[%c0_17, %c0_18] : memref<4x32xf32, #tpu.memory_space<vmem>>, vector<4x32xf32>
    %cst_19 = arith.constant dense<0.000000e+00> : vector<128x32xf32>
    %18 = tpu.matmul %16, %17, %cst_19 {dimension_numbers = #tpu.dot_dimension_numbers<[1], [0], [0], [1], [0, 0, 1, 1], [], []>} : vector<128x4xf32>, vector<4x32xf32>, vector<128x32xf32> -> vector<128x32xf32>
    %19 = arith.mulf %15, %18 : vector<128x32xf32>
    %c0_20 = arith.constant 0 : index
    %c0_21 = arith.constant 0 : index
    %20 = vector.load %arg10[%c0_20, %c0_21] : memref<32x512xf32, #tpu.memory_space<vmem>>, vector<32x512xf32>
    %cst_22 = arith.constant dense<0.000000e+00> : vector<128x512xf32>
    %21 = tpu.matmul %19, %20, %cst_22 {dimension_numbers = #tpu.dot_dimension_numbers<[1], [0], [0], [1], [0, 0, 1, 1], [], []>} : vector<128x32xf32>, vector<32x512xf32>, vector<128x512xf32> -> vector<128x512xf32>
    %22 = arith.mulf %10, %21 : vector<128x512xf32>
    %c0_23 = arith.constant 0 : index
    %c0_24 = arith.constant 0 : index
    %23 = vector.load %arg7[%c0_23, %c0_24] : memref<16x128xf32, #tpu.memory_space<vmem>>, vector<16x128xf32>
    %cst_25 = arith.constant dense<0.000000e+00> : vector<16x512xf32>
    %24 = tpu.matmul %23, %22, %cst_25 {dimension_numbers = #tpu.dot_dimension_numbers<[1], [0], [0], [1], [0, 0, 1, 1], [], []>} : vector<16x128xf32>, vector<128x512xf32>, vector<16x512xf32> -> vector<16x512xf32>
    %c0_26 = arith.constant 0 : index
    %c0_27 = arith.constant 0 : index
    %25 = vector.load %arg11[%c0_26, %c0_27] : memref<512x16xf32, #tpu.memory_space<vmem>>, vector<512x16xf32>
    %cst_28 = arith.constant dense<0.000000e+00> : vector<16x16xf32>
    %26 = tpu.matmul %24, %25, %cst_28 {dimension_numbers = #tpu.dot_dimension_numbers<[1], [0], [0], [1], [0, 0, 1, 1], [], []>} : vector<16x512xf32>, vector<512x16xf32>, vector<16x16xf32> -> vector<16x16xf32>
    %c0_29 = arith.constant 0 : index
    %c0_30 = arith.constant 0 : index
    %27 = vector.load %arg12[%c0_29, %c0_30] : memref<16x16xf32, #tpu.memory_space<vmem>>, vector<16x16xf32>
    tpu.vector_store %arg12[%c0_29, %c0_30], %26 {strides = array<i32>} : memref<16x16xf32, #tpu.memory_space<vmem>>, vector<16x16xf32>,
    return
  }
  func.func @transform_0(%arg0: i32) -> (i32, i32) {
    %c0_i32 = arith.constant 0 : i32
    %c0_i32_0 = arith.constant 0 : i32
    %c0_i32_1 = arith.constant 0 : i32
    return %c0_i32, %c0_i32_0 : i32, i32
  }
  func.func @transform_1(%arg0: i32) -> (i32, i32) {
    %c0_i32 = arith.constant 0 : i32
    %c0_i32_0 = arith.constant 0 : i32
    %c0_i32_1 = arith.constant 0 : i32
    return %c0_i32, %c0_i32_0 : i32, i32
  }
  func.func @transform_2(%arg0: i32) -> (i32, i32) {
    %c0_i32 = arith.constant 0 : i32
    %c0_i32_0 = arith.constant 0 : i32
    %c0_i32_1 = arith.constant 0 : i32
    return %c0_i32, %c0_i32_0 : i32, i32
  }
  func.func @transform_3(%arg0: i32) -> (i32, i32) {
    %c0_i32 = arith.constant 0 : i32
    %c0_i32_0 = arith.constant 0 : i32
    %c0_i32_1 = arith.constant 0 : i32
    return %c0_i32, %c0_i32_0 : i32, i32
  }
  func.func @transform_4(%arg0: i32) -> (i32, i32) {
    %c0_i32 = arith.constant 0 : i32
    %c0_i32_0 = arith.constant 0 : i32
    %c0_i32_1 = arith.constant 0 : i32
    return %c0_i32, %c0_i32_0 : i32, i32
  }
  func.func @transform_5(%arg0: i32) -> (i32, i32) {
    %c0_i32 = arith.constant 0 : i32
    %c0_i32_0 = arith.constant 0 : i32
    %c0_i32_1 = arith.constant 0 : i32
    return %c0_i32, %c0_i32_0 : i32, i32
  }
  func.func @transform_6(%arg0: i32) -> (i32, i32) {
    %c0_i32 = arith.constant 0 : i32
    %c0_i32_0 = arith.constant 0 : i32
    %c0_i32_1 = arith.constant 0 : i32
    return %c0_i32, %c0_i32_0 : i32, i32
  }
  func.func @transform_7(%arg0: i32) -> (i32, i32) {
    %c0_i32 = arith.constant 0 : i32
    %c0_i32_0 = arith.constant 0 : i32
    %c0_i32_1 = arith.constant 0 : i32
    return %c0_i32, %c0_i32_0 : i32, i32
  }
  func.func @transform_8(%arg0: i32) -> (i32, i32) {
    %c0_i32 = arith.constant 0 : i32
    %c0_i32_0 = arith.constant 0 : i32
    %c0_i32_1 = arith.constant 0 : i32
    return %c0_i32, %c0_i32_0 : i32, i32
  }
  func.func @transform_9(%arg0: i32) -> (i32, i32) {
    %c0_i32 = arith.constant 0 : i32
    %c0_i32_0 = arith.constant 0 : i32
    %c0_i32_1 = arith.constant 0 : i32
    return %c0_i32, %c0_i32_0 : i32, i32
  }
  func.func @transform_10(%arg0: i32) -> (i32, i32) {
    %c0_i32 = arith.constant 0 : i32
    %c0_i32_0 = arith.constant 0 : i32
    %c0_i32_1 = arith.constant 0 : i32
    return %c0_i32, %c0_i32_0 : i32, i32
  }
  func.func @transform_11(%arg0: i32) -> (i32, i32) {
    %c0_i32 = arith.constant 0 : i32
    %c0_i32_0 = arith.constant 0 : i32
    %c0_i32_1 = arith.constant 0 : i32
    return %c0_i32, %c0_i32_0 : i32, i32
  }
}

</mosaic_0001>

<llo_original>
// kernel: tpu_custom_call.1
$region0: #{tpu_custom_call.1}
  #allocation0 [shape = 'u32[]', space=smem, size = 0x4, offset = 0x4, fixed_abs, tag = 'smem constant byte address 0x4 - core index']
  #allocation1 [shape = 'u32[144,128]{1,0:T(1,128)}', space=vmem, size = 0x12000, scoped, tag = 'internal scratch']
  %s0 = inlined_call_operand.vmem [shape: f32[16,8], index: 0, kind: input, shape index: {}]
  %s1 = inlined_call_operand.vmem [shape: f32[128,4], index: 1, kind: input, shape index: {}]
  %s2 = inlined_call_operand.vmem [shape: f32[128,16], index: 2, kind: input, shape index: {}]
  %s3 = inlined_call_operand.vmem [shape: f32[16,64], index: 3, kind: input, shape index: {}]
  %s4 = inlined_call_operand.vmem [shape: f32[64,512], index: 4, kind: input, shape index: {}]
  %s5 = inlined_call_operand.vmem [shape: f32[128,16], index: 5, kind: input, shape index: {}]
  %s6 = inlined_call_operand.vmem [shape: f32[16,128], index: 6, kind: input, shape index: {}]
  %s7 = inlined_call_operand.vmem [shape: f32[8,32], index: 7, kind: input, shape index: {}]
  %s8 = inlined_call_operand.vmem [shape: f32[4,32], index: 8, kind: input, shape index: {}]
  %s9 = inlined_call_operand.vmem [shape: f32[32,512], index: 9, kind: input, shape index: {}]
  %s10 = inlined_call_operand.vmem [shape: f32[512,16], index: 10, kind: input, shape index: {}]
  %s11 = inlined_call_operand.hbm [shape: f32[16,16], index: 11, kind: output, shape index: {}]
  %s12 = sld [smem:[#allocation0]]
  $region54: #{tpu_custom_call.1} parent=0
    _
  %s14 = ssub.s32 1, %s12
  %s15 = scalar_select 0, %s14, %s12
  $region1: #{tpu_custom_call.1} parent=0
    #allocation2 [shape = 'u8[8192]{0}', space=vmem, size = 0x2000, scoped, tag = 'output window, operand 0, single buffered']
    #allocation3 [shape = 's32[1]{0}', space=sflag, size = 0x4, scoped, tag = 'scoped memory for tpu_custom_call.1']
    %16 = vsyncpa [#allocation3], 0
    // Predicated region
    $region2: #{tpu_custom_call.1} parent=1 // pred_check
      _
    $region3: #{tpu_custom_call.1} parent=1 // pred_check_branch
      %18 = sbr.rel (0) target = $region5
    $region4: #{tpu_custom_call.1} parent=1 // pred_region
      _
    $region5: #{tpu_custom_call.1} parent=1 // pred_fallthru
      _
    // Predicated region
    $region6: #{tpu_custom_call.1} parent=1 // pred_check
      _
    $region7: #{tpu_custom_call.1} parent=1 // pred_check_branch
      %20 = sbr.rel (0) target = $region9
    $region8: #{tpu_custom_call.1} parent=1 // pred_region
      _
    $region9: #{tpu_custom_call.1} parent=1 // pred_fallthru
      _
    // Predicated region
    $region10: #{tpu_custom_call.1} parent=1 // pred_check
      _
    $region11: #{tpu_custom_call.1} parent=1 // pred_check_branch
      %22 = sbr.rel (0) target = $region13
    $region12: #{tpu_custom_call.1} parent=1 // pred_region
      _
    $region13: #{tpu_custom_call.1} parent=1 // pred_fallthru
      _
    // Predicated region
    $region14: #{tpu_custom_call.1} parent=1 // pred_check
      _
    $region15: #{tpu_custom_call.1} parent=1 // pred_check_branch
      %24 = sbr.rel (0) target = $region17
    $region16: #{tpu_custom_call.1} parent=1 // pred_region
      _
    $region17: #{tpu_custom_call.1} parent=1 // pred_fallthru
      _
    // Predicated region
    $region18: #{tpu_custom_call.1} parent=1 // pred_check
      _
    $region19: #{tpu_custom_call.1} parent=1 // pred_check_branch
      %26 = sbr.rel (0) target = $region21
    $region20: #{tpu_custom_call.1} parent=1 // pred_region
      _
    $region21: #{tpu_custom_call.1} parent=1 // pred_fallthru
      _
    // Predicated region
    $region22: #{tpu_custom_call.1} parent=1 // pred_check
      _
    $region23: #{tpu_custom_call.1} parent=1 // pred_check_branch
      %28 = sbr.rel (0) target = $region25
    $region24: #{tpu_custom_call.1} parent=1 // pred_region
      _
    $region25: #{tpu_custom_call.1} parent=1 // pred_fallthru
      _
    // Predicated region
    $region26: #{tpu_custom_call.1} parent=1 // pred_check
      _
    $region27: #{tpu_custom_call.1} parent=1 // pred_check_branch
      %30 = sbr.rel (0) target = $region29
    $region28: #{tpu_custom_call.1} parent=1 // pred_region
      _
    $region29: #{tpu_custom_call.1} parent=1 // pred_fallthru
      _
    // Predicated region
    $region30: #{tpu_custom_call.1} parent=1 // pred_check
      _
    $region31: #{tpu_custom_call.1} parent=1 // pred_check_branch
      %32 = sbr.rel (0) target = $region33
    $region32: #{tpu_custom_call.1} parent=1 // pred_region
      _
    $region33: #{tpu_custom_call.1} parent=1 // pred_fallthru
      _
    // Predicated region
    $region34: #{tpu_custom_call.1} parent=1 // pred_check
      _
    $region35: #{tpu_custom_call.1} parent=1 // pred_check_branch
      %34 = sbr.rel (0) target = $region37
    $region36: #{tpu_custom_call.1} parent=1 // pred_region
      _
    $region37: #{tpu_custom_call.1} parent=1 // pred_fallthru
      _
    // Predicated region
    $region38: #{tpu_custom_call.1} parent=1 // pred_check
      _
    $region39: #{tpu_custom_call.1} parent=1 // pred_check_branch
      %36 = sbr.rel (0) target = $region41
    $region40: #{tpu_custom_call.1} parent=1 // pred_region
      _
    $region41: #{tpu_custom_call.1} parent=1 // pred_fallthru
      _
    // Predicated region
    $region42: #{tpu_custom_call.1} parent=1 // pred_check
      _
    $region43: #{tpu_custom_call.1} parent=1 // pred_check_branch
      %38 = sbr.rel (0) target = $region45
    $region44: #{tpu_custom_call.1} parent=1 // pred_region
      _
    $region45: #{tpu_custom_call.1} parent=1 // pred_fallthru
      _
    %v39 = vld [vmem:[%s2] sm:$0xff]
    %v40 = vld [vmem:[%s2 + $0x8] sm:$0xff]
    %v41 = vld [vmem:[%s2 + $0x10] sm:$0xff]
    %v42 = vld [vmem:[%s2 + $0x18] sm:$0xff]
    %v43 = vld [vmem:[%s2 + $0x20] sm:$0xff]
    %v44 = vld [vmem:[%s2 + $0x28] sm:$0xff]
    %v45 = vld [vmem:[%s2 + $0x30] sm:$0xff]
    %v46 = vld [vmem:[%s2 + $0x38] sm:$0xff]
    %v47 = vld [vmem:[%s2 + $0x40] sm:$0xff]
    %v48 = vld [vmem:[%s2 + $0x48] sm:$0xff]
    %v49 = vld [vmem:[%s2 + $0x50] sm:$0xff]
    %v50 = vld [vmem:[%s2 + $0x58] sm:$0xff]
    %v51 = vld [vmem:[%s2 + $0x60] sm:$0xff]
    %v52 = vld [vmem:[%s2 + $0x68] sm:$0xff]
    %v53 = vld [vmem:[%s2 + $0x70] sm:$0xff]
    %v54 = vld [vmem:[%s2 + $0x78] sm:$0xff]
    %v55 = vld [vmem:[%s3] sm:$0xff]
    %v56 = vld [vmem:[%s3 + $0x8] sm:$0xff]
    %vm57 = vcmask 130048
    %v59 = vsel %vm57, %v39, 0
    %v62 = vsel %vm57, %v40, 0
    %v65 = vsel %vm57, %v41, 0
    %v68 = vsel %vm57, %v42, 0
    %v71 = vsel %vm57, %v43, 0
    %v74 = vsel %vm57, %v44, 0
    %v77 = vsel %vm57, %v45, 0
    %v80 = vsel %vm57, %v46, 0
    %v83 = vsel %vm57, %v47, 0
    %v86 = vsel %vm57, %v48, 0
    %v89 = vsel %vm57, %v49, 0
    %v92 = vsel %vm57, %v50, 0
    %v95 = vsel %vm57, %v51, 0
    %v98 = vsel %vm57, %v52, 0
    %v101 = vsel %vm57, %v53, 0
    %v104 = vsel %vm57, %v54, 0
    %106 = vmatprep.subr.mxu0 0.0
    %107 = vmatpush1.msra.mxu0 %v55
    %108 = vmatprep.subr.mxu0 0.0
    %109 = vmatpush1.msra.mxu0 %v56
    %110 = vmatprep.subr.mxu0 0.0
    %111 = vmatpush1.msra.mxu0 0.0
    %112 = vmatprep.subr.mxu0 0.0
    %113 = vmatpush1.msra.mxu0 0.0
    %114 = vmatprep.subr.mxu0 0.0
    %115 = vmatpush1.msra.mxu0 0.0
    %116 = vmatprep.subr.mxu0 0.0
    %117 = vmatpush1.msra.mxu0 0.0
    %118 = vmatprep.subr.mxu0 0.0
    %119 = vmatpush1.msra.mxu0 0.0
    %120 = vmatprep.subr.mxu0 0.0
    %121 = vmatpush1.msra.mxu0 0.0
    %122 = vmatprep.subr.mxu0 0.0
    %123 = vmatpush1.msra.mxu0 0.0
    %124 = vmatprep.subr.mxu0 0.0
    %125 = vmatpush1.msra.mxu0 0.0
    %126 = vmatprep.subr.mxu0 0.0
    %127 = vmatpush1.msra.mxu0 0.0
    %128 = vmatprep.subr.mxu0 0.0
    %129 = vmatpush1.msra.mxu0 0.0
    %130 = vmatprep.subr.mxu0 0.0
    %131 = vmatpush1.msra.mxu0 0.0
    %132 = vmatprep.subr.mxu0 0.0
    %133 = vmatpush1.msra.mxu0 0.0
    %134 = vmatprep.subr.mxu0 0.0
    %135 = vmatpush1.msra.mxu0 0.0
    %136 = vmatprep.subr.mxu0 0.0
    %137 = vmatpush1.msra.mxu0 0.0
    %138 = vmatprep.subr.mxu0 0.0
    %139 = vmatpush1.msra.mxu0 0.0
    %140 = vmatprep.subr.mxu0 0.0
    %141 = vmatpush1.msra.mxu0 0.0
    %142 = vmatprep.subr.mxu0 0.0
    %143 = vmatpush1.msra.mxu0 0.0
    %144 = vmatprep.subr.mxu0 0.0
    %145 = vmatpush1.msra.mxu0 0.0
    %146 = vmatprep.subr.mxu0 0.0
    %147 = vmatpush1.msra.mxu0 0.0
    %148 = vmatprep.subr.mxu0 0.0
    %149 = vmatpush1.msra.mxu0 0.0
    %150 = vmatprep.subr.mxu0 0.0
    %151 = vmatpush1.msra.mxu0 0.0
    %152 = vmatprep.subr.mxu0 0.0
    %153 = vmatpush1.msra.mxu0 0.0
    %154 = vmatprep.subr.mxu0 0.0
    %155 = vmatpush1.msra.mxu0 0.0
    %156 = vmatprep.subr.mxu0 0.0
    %157 = vmatpush1.msra.mxu0 0.0
    %158 = vmatprep.subr.mxu0 0.0
    %159 = vmatpush1.msra.mxu0 0.0
    %160 = vmatprep.subr.mxu0 0.0
    %161 = vmatpush1.msra.mxu0 0.0
    %162 = vmatprep.subr.mxu0 0.0
    %163 = vmatpush1.msra.mxu0 0.0
    %164 = vmatprep.subr.mxu0 0.0
    %165 = vmatpush1.msra.mxu0 0.0
    %166 = vmatprep.subr.mxu0 0.0
    %167 = vmatpush1.msra.mxu0 0.0
    %168 = vmatprep.subr.mxu0 0.0
    %169 = vmatpush1.msra.mxu0 0.0
    %170 = vmatprep.mubr.f32.mxu0 0.0
    %171 = vmatmul.mubr.f32.gmra.mrb[0].mxu0 %v59
    %v172 = vpop.f32.mrb[0].mxu0
    %v173 = vadd.f32 0.0, %v172
    %v174 = vpop.f32.mrb[0].mxu0
    %175 = vmatprep.mubr.f32.mxu0 0.0
    %176 = vmatmul.mubr.f32.gmra.mrb[0].mxu0 %v62
    %v177 = vpop.f32.mrb[0].mxu0
    %v178 = vadd.f32 0.0, %v177
    %v179 = vpop.f32.mrb[0].mxu0
    %180 = vmatprep.mubr.f32.mxu0 0.0
    %181 = vmatmul.mubr.f32.gmra.mrb[0].mxu0 %v65
    %v182 = vpop.f32.mrb[0].mxu0
    %v183 = vadd.f32 0.0, %v182
    %v184 = vpop.f32.mrb[0].mxu0
    %185 = vmatprep.mubr.f32.mxu0 0.0
    %186 = vmatmul.mubr.f32.gmra.mrb[0].mxu0 %v68
    %v187 = vpop.f32.mrb[0].mxu0
    %v188 = vadd.f32 0.0, %v187
    %v189 = vpop.f32.mrb[0].mxu0
    %190 = vmatprep.mubr.f32.mxu0 0.0
    %191 = vmatmul.mubr.f32.gmra.mrb[0].mxu0 %v71
    %v192 = vpop.f32.mrb[0].mxu0
    %v193 = vadd.f32 0.0, %v192
    %v194 = vpop.f32.mrb[0].mxu0
    %195 = vmatprep.mubr.f32.mxu0 0.0
    %196 = vmatmul.mubr.f32.gmra.mrb[0].mxu0 %v74
    %v197 = vpop.f32.mrb[0].mxu0
    %v198 = vadd.f32 0.0, %v197
    %v199 = vpop.f32.mrb[0].mxu0
    %200 = vmatprep.mubr.f32.mxu0 0.0
    %201 = vmatmul.mubr.f32.gmra.mrb[0].mxu0 %v77
    %v202 = vpop.f32.mrb[0].mxu0
    %v203 = vadd.f32 0.0, %v202
    %v204 = vpop.f32.mrb[0].mxu0
    %205 = vmatprep.mubr.f32.mxu0 0.0
    %206 = vmatmul.mubr.f32.gmra.mrb[0].mxu0 %v80
    %v207 = vpop.f32.mrb[0].mxu0
    %v208 = vadd.f32 0.0, %v207
    %v209 = vpop.f32.mrb[0].mxu0
    %210 = vmatprep.mubr.f32.mxu0 0.0
    %211 = vmatmul.mubr.f32.gmra.mrb[0].mxu0 %v83
    %v212 = vpop.f32.mrb[0].mxu0
    %v213 = vadd.f32 0.0, %v212
    %v214 = vpop.f32.mrb[0].mxu0
    %215 = vmatprep.mubr.f32.mxu0 0.0
    %216 = vmatmul.mubr.f32.gmra.mrb[0].mxu0 %v86
    %v217 = vpop.f32.mrb[0].mxu0
    %v218 = vadd.f32 0.0, %v217
    %v219 = vpop.f32.mrb[0].mxu0
    %220 = vmatprep.mubr.f32.mxu0 0.0
    %221 = vmatmul.mubr.f32.gmra.mrb[0].mxu0 %v89
    %v222 = vpop.f32.mrb[0].mxu0
    %v223 = vadd.f32 0.0, %v222
    %v224 = vpop.f32.mrb[0].mxu0
    %225 = vmatprep.mubr.f32.mxu0 0.0
    %226 = vmatmul.mubr.f32.gmra.mrb[0].mxu0 %v92
    %v227 = vpop.f32.mrb[0].mxu0
    %v228 = vadd.f32 0.0, %v227
    %v229 = vpop.f32.mrb[0].mxu0
    %230 = vmatprep.mubr.f32.mxu0 0.0
    %231 = vmatmul.mubr.f32.gmra.mrb[0].mxu0 %v95
    %v232 = vpop.f32.mrb[0].mxu0
    %v233 = vadd.f32 0.0, %v232
    %v234 = vpop.f32.mrb[0].mxu0
    %235 = vmatprep.mubr.f32.mxu0 0.0
    %236 = vmatmul.mubr.f32.gmra.mrb[0].mxu0 %v98
    %v237 = vpop.f32.mrb[0].mxu0
    %v238 = vadd.f32 0.0, %v237
    %v239 = vpop.f32.mrb[0].mxu0
    %240 = vmatprep.mubr.f32.mxu0 0.0
    %241 = vmatmul.mubr.f32.gmra.mrb[0].mxu0 %v101
    %v242 = vpop.f32.mrb[0].mxu0
    %v243 = vadd.f32 0.0, %v242
    %v244 = vpop.f32.mrb[0].mxu0
    %245 = vmatprep.mubr.f32.mxu0 0.0
    %246 = vmatmul.mubr.f32.gmra.mrb[0].mxu0 %v104
    %v247 = vpop.f32.mrb[0].mxu0
    %v248 = vadd.f32 0.0, %v247
    %v249 = vpop.f32.mrb[0].mxu0
    %250 = vdwg.mxu0
    %v251 = vxor.u32 %v173, 2147483648
    %v252 = vxor.u32 %v178, 2147483648
    %v253 = vxor.u32 %v183, 2147483648
    %v254 = vxor.u32 %v188, 2147483648
    %v255 = vxor.u32 %v193, 2147483648
    %v256 = vxor.u32 %v198, 2147483648
    %v257 = vxor.u32 %v203, 2147483648
    %v258 = vxor.u32 %v208, 2147483648
    %v259 = vxor.u32 %v213, 2147483648
    %v260 = vxor.u32 %v218, 2147483648
    %v261 = vxor.u32 %v223, 2147483648
    %v262 = vxor.u32 %v228, 2147483648
    %v263 = vxor.u32 %v233, 2147483648
    %v264 = vxor.u32 %v238, 2147483648
    %v265 = vxor.u32 %v243, 2147483648
    %v266 = vxor.u32 %v248, 2147483648
    %v267 = vmul.f32 %v251, 1.442695
    %v268 = vpow.pop %v267
    %v269 = vmul.f32 %v252, 1.442695
    %v270 = vpow.pop %v269
    %v271 = vmul.f32 %v253, 1.442695
    %v272 = vpow.pop %v271
    %v273 = vmul.f32 %v254, 1.442695
    %v274 = vpow.pop %v273
    %v275 = vmul.f32 %v255, 1.442695
    %v276 = vpow.pop %v275
    %v277 = vmul.f32 %v256, 1.442695
    %v278 = vpow.pop %v277
    %v279 = vmul.f32 %v257, 1.442695
    %v280 = vpow.pop %v279
    %v281 = vmul.f32 %v258, 1.442695
    %v282 = vpow.pop %v281
    %v283 = vmul.f32 %v259, 1.442695
    %v284 = vpow.pop %v283
    %v285 = vmul.f32 %v260, 1.442695
    %v286 = vpow.pop %v285
    %v287 = vmul.f32 %v261, 1.442695
    %v288 = vpow.pop %v287
    %v289 = vmul.f32 %v262, 1.442695
    %v290 = vpow.pop %v289
    %v291 = vmul.f32 %v263, 1.442695
    %v292 = vpow.pop %v291
    %v293 = vmul.f32 %v264, 1.442695
    %v294 = vpow.pop %v293
    %v295 = vmul.f32 %v265, 1.442695
    %v296 = vpow.pop %v295
    %v297 = vmul.f32 %v266, 1.442695
    %v298 = vpow.pop %v297
    %v299 = vadd.f32 %v268, 1.0
    %v300 = vadd.f32 %v270, 1.0
    %v301 = vadd.f32 %v272, 1.0
    %v302 = vadd.f32 %v274, 1.0
    %v303 = vadd.f32 %v276, 1.0
    %v304 = vadd.f32 %v278, 1.0
    %v305 = vadd.f32 %v280, 1.0
    %v306 = vadd.f32 %v282, 1.0
    %v307 = vadd.f32 %v284, 1.0
    %v308 = vadd.f32 %v286, 1.0
    %v309 = vadd.f32 %v288, 1.0
    %v310 = vadd.f32 %v290, 1.0
    %v311 = vadd.f32 %v292, 1.0
    %v312 = vadd.f32 %v294, 1.0
    %v313 = vadd.f32 %v296, 1.0
    %v314 = vadd.f32 %v298, 1.0
    %v315 = vrcp.pop %v299
    %v316 = vmul.f32 1.0, %v315
    %v317 = vrcp.pop %v300
    %v318 = vmul.f32 1.0, %v317
    %v319 = vrcp.pop %v301
    %v320 = vmul.f32 1.0, %v319
    %v321 = vrcp.pop %v302
    %v322 = vmul.f32 1.0, %v321
    %v323 = vrcp.pop %v303
    %v324 = vmul.f32 1.0, %v323
    %v325 = vrcp.pop %v304
    %v326 = vmul.f32 1.0, %v325
    %v327 = vrcp.pop %v305
    %v328 = vmul.f32 1.0, %v327
    %v329 = vrcp.pop %v306
    %v330 = vmul.f32 1.0, %v329
    %v331 = vrcp.pop %v307
    %v332 = vmul.f32 1.0, %v331
    %v333 = vrcp.pop %v308
    %v334 = vmul.f32 1.0, %v333
    %v335 = vrcp.pop %v309
    %v336 = vmul.f32 1.0, %v335
    %v337 = vrcp.pop %v310
    %v338 = vmul.f32 1.0, %v337
    %v339 = vrcp.pop %v311
    %v340 = vmul.f32 1.0, %v339
    %v341 = vrcp.pop %v312
    %v342 = vmul.f32 1.0, %v341
    %v343 = vrcp.pop %v313
    %v344 = vmul.f32 1.0, %v343
    %v345 = vrcp.pop %v314
    %v346 = vmul.f32 1.0, %v345
    %v347 = vmul.f32 %v173, %v316
    %v348 = vmul.f32 %v178, %v318
    %v349 = vmul.f32 %v183, %v320
    %v350 = vmul.f32 %v188, %v322
    %v351 = vmul.f32 %v193, %v324
    %v352 = vmul.f32 %v198, %v326
    %v353 = vmul.f32 %v203, %v328
    %v354 = vmul.f32 %v208, %v330
    %v355 = vmul.f32 %v213, %v332
    %v356 = vmul.f32 %v218, %v334
    %v357 = vmul.f32 %v223, %v336
    %v358 = vmul.f32 %v228, %v338
    %v359 = vmul.f32 %v233, %v340
    %v360 = vmul.f32 %v238, %v342
    %v361 = vmul.f32 %v243, %v344
    %v362 = vmul.f32 %v248, %v346
    %v363 = vld [vmem:[%s4] sm:$0xff]
    %v364 = vld [vmem:[%s4 + $0x8] sm:$0xff]
    %v365 = vld [vmem:[%s4 + $0x10] sm:$0xff]
    %v366 = vld [vmem:[%s4 + $0x18] sm:$0xff]
    %v367 = vld [vmem:[%s4 + $0x20] sm:$0xff]
    %v368 = vld [vmem:[%s4 + $0x28] sm:$0xff]
    %v369 = vld [vmem:[%s4 + $0x30] sm:$0xff]
    %v370 = vld [vmem:[%s4 + $0x38] sm:$0xff]
    %v371 = vld [vmem:[%s4 + $0x40] sm:$0xff]
    %v372 = vld [vmem:[%s4 + $0x48] sm:$0xff]
    %v373 = vld [vmem:[%s4 + $0x50] sm:$0xff]
    %v374 = vld [vmem:[%s4 + $0x58] sm:$0xff]
    %v375 = vld [vmem:[%s4 + $0x60] sm:$0xff]
    %v376 = vld [vmem:[%s4 + $0x68] sm:$0xff]
    %v377 = vld [vmem:[%s4 + $0x70] sm:$0xff]
    %v378 = vld [vmem:[%s4 + $0x78] sm:$0xff]
    %v379 = vld [vmem:[%s4 + $0x80] sm:$0xff]
    %v380 = vld [vmem:[%s4 + $0x88] sm:$0xff]
    %v381 = vld [vmem:[%s4 + $0x90] sm:$0xff]
    %v382 = vld [vmem:[%s4 + $0x98] sm:$0xff]
    %v383 = vld [vmem:[%s4 + $0xa0] sm:$0xff]
    %v384 = vld [vmem:[%s4 + $0xa8] sm:$0xff]
    %v385 = vld [vmem:[%s4 + $0xb0] sm:$0xff]
    %v386 = vld [vmem:[%s4 + $0xb8] sm:$0xff]
    %v387 = vld [vmem:[%s4 + $0xc0] sm:$0xff]
    %v388 = vld [vmem:[%s4 + $0xc8] sm:$0xff]
    %v389 = vld [vmem:[%s4 + $0xd0] sm:$0xff]
    %v390 = vld [vmem:[%s4 + $0xd8] sm:$0xff]
    %v391 = vld [vmem:[%s4 + $0xe0] sm:$0xff]
    %v392 = vld [vmem:[%s4 + $0xe8] sm:$0xff]
    %v393 = vld [vmem:[%s4 + $0xf0] sm:$0xff]
    %v394 = vld [vmem:[%s4 + $0xf8] sm:$0xff]
    %vm395 = vcmask 523264
    %v397 = vsel %vm395, %v347, 0
    %v400 = vsel %vm395, %v348, 0
    %v403 = vsel %vm395, %v349, 0
    %v406 = vsel %vm395, %v350, 0
    %v409 = vsel %vm395, %v351, 0
    %v412 = vsel %vm395, %v352, 0
    %v415 = vsel %vm395, %v353, 0
    %v418 = vsel %vm395, %v354, 0
    %v421 = vsel %vm395, %v355, 0
    %v424 = vsel %vm395, %v356, 0
    %v427 = vsel %vm395, %v357, 0
    %v430 = vsel %vm395, %v358, 0
    %v433 = vsel %vm395, %v359, 0
    %v436 = vsel %vm395, %v360, 0
    %v439 = vsel %vm395, %v361, 0
    %v442 = vsel %vm395, %v362, 0
    %444 = vmatprep.subr.mxu0 %v364
    %445 = vmatpush1.msra.mxu0 %v363
    %446 = vmatprep.subr.mxu0 %v368
    %447 = vmatpush1.msra.mxu0 %v367
    %448 = vmatprep.subr.mxu0 %v372
    %449 = vmatpush1.msra.mxu0 %v371
    %450 = vmatprep.subr.mxu0 %v376
    %451 = vmatpush1.msra.mxu0 %v375
    %452 = vmatprep.subr.mxu0 %v380
    %453 = vmatpush1.msra.mxu0 %v379
    %454 = vmatprep.subr.mxu0 %v384
    %455 = vmatpush1.msra.mxu0 %v383
    %456 = vmatprep.subr.mxu0 %v388
    %457 = vmatpush1.msra.mxu0 %v387
    %458 = vmatprep.subr.mxu0 %v392
    %459 = vmatpush1.msra.mxu0 %v391
    %460 = vmatprep.subr.mxu0 0.0
    %461 = vmatpush1.msra.mxu0 0.0
    %462 = vmatprep.subr.mxu0 0.0
    %463 = vmatpush1.msra.mxu0 0.0
    %464 = vmatprep.subr.mxu0 0.0
    %465 = vmatpush1.msra.mxu0 0.0
    %466 = vmatprep.subr.mxu0 0.0
    %467 = vmatpush1.msra.mxu0 0.0
    %468 = vmatprep.subr.mxu0 0.0
    %469 = vmatpush1.msra.mxu0 0.0
    %470 = vmatprep.subr.mxu0 0.0
    %471 = vmatpush1.msra.mxu0 0.0
    %472 = vmatprep.subr.mxu0 0.0
    %473 = vmatpush1.msra.mxu0 0.0
    %474 = vmatprep.subr.mxu0 0.0
    %475 = vmatpush1.msra.mxu0 0.0
    %476 = vmatprep.subr.mxu0 0.0
    %477 = vmatpush1.msra.mxu0 0.0
    %478 = vmatprep.subr.mxu0 0.0
    %479 = vmatpush1.msra.mxu0 0.0
    %480 = vmatprep.subr.mxu0 0.0
    %481 = vmatpush1.msra.mxu0 0.0
    %482 = vmatprep.subr.mxu0 0.0
    %483 = vmatpush1.msra.mxu0 0.0
    %484 = vmatprep.subr.mxu0 0.0
    %485 = vmatpush1.msra.mxu0 0.0
    %486 = vmatprep.subr.mxu0 0.0
    %487 = vmatpush1.msra.mxu0 0.0
    %488 = vmatprep.subr.mxu0 0.0
    %489 = vmatpush1.msra.mxu0 0.0
    %490 = vmatprep.subr.mxu0 0.0
    %491 = vmatpush1.msra.mxu0 0.0
    %492 = vmatprep.subr.mxu0 0.0
    %493 = vmatpush1.msra.mxu0 0.0
    %494 = vmatprep.subr.mxu0 0.0
    %495 = vmatpush1.msra.mxu0 0.0
    %496 = vmatprep.subr.mxu0 0.0
    %497 = vmatpush1.msra.mxu0 0.0
    %498 = vmatprep.subr.mxu0 0.0
    %499 = vmatpush1.msra.mxu0 0.0
    %500 = vmatprep.subr.mxu0 0.0
    %501 = vmatpush1.msra.mxu0 0.0
    %502 = vmatprep.subr.mxu0 0.0
    %503 = vmatpush1.msra.mxu0 0.0
    %504 = vmatprep.subr.mxu0 0.0
    %505 = vmatpush1.msra.mxu0 0.0
    %506 = vmatprep.subr.mxu0 0.0
    %507 = vmatpush1.msra.mxu0 0.0
    %508 = vmatprep.mubr.f32.mxu0 0.0
    %509 = vmatmul.mubr.f32.gmra.mrb[0].mxu0 %v397
    %v510 = vpop.f32.mrb[0].mxu0
    %v511 = vadd.f32 0.0, %v510
    %v512 = vpop.f32.mrb[0].mxu0
    %v513 = vadd.f32 0.0, %v512
    %514 = vmatprep.mubr.f32.mxu0 0.0
    %515 = vmatmul.mubr.f32.gmra.mrb[0].mxu0 %v400
    %v516 = vpop.f32.mrb[0].mxu0
    %v517 = vadd.f32 0.0, %v516
    %v518 = vpop.f32.mrb[0].mxu0
    %v519 = vadd.f32 0.0, %v518
    %520 = vmatprep.mubr.f32.mxu0 0.0
    %521 = vmatmul.mubr.f32.gmra.mrb[0].mxu0 %v403
    %v522 = vpop.f32.mrb[0].mxu0
    %v523 = vadd.f32 0.0, %v522
    %v524 = vpop.f32.mrb[0].mxu0
    %v525 = vadd.f32 0.0, %v524
    %526 = vmatprep.mubr.f32.mxu0 0.0
    %527 = vmatmul.mubr.f32.gmra.mrb[0].mxu0 %v406
    %v528 = vpop.f32.mrb[0].mxu0
    %v529 = vadd.f32 0.0, %v528
    %v530 = vpop.f32.mrb[0].mxu0
    %v531 = vadd.f32 0.0, %v530
    %532 = vmatprep.mubr.f32.mxu0 0.0
    %533 = vmatmul.mubr.f32.gmra.mrb[0].mxu0 %v409
    %v534 = vpop.f32.mrb[0].mxu0
    %v535 = vadd.f32 0.0, %v534
    %v536 = vpop.f32.mrb[0].mxu0
    %v537 = vadd.f32 0.0, %v536
    %538 = vmatprep.mubr.f32.mxu0 0.0
    %539 = vmatmul.mubr.f32.gmra.mrb[0].mxu0 %v412
    %v540 = vpop.f32.mrb[0].mxu0
    %v541 = vadd.f32 0.0, %v540
    %v542 = vpop.f32.mrb[0].mxu0
    %v543 = vadd.f32 0.0, %v542
    %544 = vmatprep.mubr.f32.mxu0 0.0
    %545 = vmatmul.mubr.f32.gmra.mrb[0].mxu0 %v415
    %v546 = vpop.f32.mrb[0].mxu0
    %v547 = vadd.f32 0.0, %v546
    %v548 = vpop.f32.mrb[0].mxu0
    %v549 = vadd.f32 0.0, %v548
    %550 = vmatprep.mubr.f32.mxu0 0.0
    %551 = vmatmul.mubr.f32.gmra.mrb[0].mxu0 %v418
    %v552 = vpop.f32.mrb[0].mxu0
    %v553 = vadd.f32 0.0, %v552
    %v554 = vpop.f32.mrb[0].mxu0
    %v555 = vadd.f32 0.0, %v554
    %556 = vmatprep.mubr.f32.mxu0 0.0
    %557 = vmatmul.mubr.f32.gmra.mrb[0].mxu0 %v421
    %v558 = vpop.f32.mrb[0].mxu0
    %v559 = vadd.f32 0.0, %v558
    %v560 = vpop.f32.mrb[0].mxu0
    %v561 = vadd.f32 0.0, %v560
    %562 = vmatprep.mubr.f32.mxu0 0.0
    %563 = vmatmul.mubr.f32.gmra.mrb[0].mxu0 %v424
    %v564 = vpop.f32.mrb[0].mxu0
    %v565 = vadd.f32 0.0, %v564
    %v566 = vpop.f32.mrb[0].mxu0
    %v567 = vadd.f32 0.0, %v566
    %568 = vmatprep.mubr.f32.mxu0 0.0
    %569 = vmatmul.mubr.f32.gmra.mrb[0].mxu0 %v427
    %v570 = vpop.f32.mrb[0].mxu0
    %v571 = vadd.f32 0.0, %v570
    %v572 = vpop.f32.mrb[0].mxu0
    %v573 = vadd.f32 0.0, %v572
    %574 = vmatprep.mubr.f32.mxu0 0.0
    %575 = vmatmul.mubr.f32.gmra.mrb[0].mxu0 %v430
    %v576 = vpop.f32.mrb[0].mxu0
    %v577 = vadd.f32 0.0, %v576
    %v578 = vpop.f32.mrb[0].mxu0
    %v579 = vadd.f32 0.0, %v578
    %580 = vmatprep.mubr.f32.mxu0 0.0
    %581 = vmatmul.mubr.f32.gmra.mrb[0].mxu0 %v433
    %v582 = vpop.f32.mrb[0].mxu0
    %v583 = vadd.f32 0.0, %v582
    %v584 = vpop.f32.mrb[0].mxu0
    %v585 = vadd.f32 0.0, %v584
    %586 = vmatprep.mubr.f32.mxu0 0.0
    %587 = vmatmul.mubr.f32.gmra.mrb[0].mxu0 %v436
    %v588 = vpop.f32.mrb[0].mxu0
    %v589 = vadd.f32 0.0, %v588
    %v590 = vpop.f32.mrb[0].mxu0
    %v591 = vadd.f32 0.0, %v590
    %592 = vmatprep.mubr.f32.mxu0 0.0
    %593 = vmatmul.mubr.f32.gmra.mrb[0].mxu0 %v439
    %v594 = vpop.f32.mrb[0].mxu0
    %v595 = vadd.f32 0.0, %v594
    %v596 = vpop.f32.mrb[0].mxu0
    %v597 = vadd.f32 0.0, %v596
    %598 = vmatprep.mubr.f32.mxu0 0.0
    %599 = vmatmul.mubr.f32.gmra.mrb[0].mxu0 %v442
    %v600 = vpop.f32.mrb[0].mxu0
    %v601 = vadd.f32 0.0, %v600
    %v602 = vpop.f32.mrb[0].mxu0
    %v603 = vadd.f32 0.0, %v602
    %604 = vdwg.mxu0
    %605 = vmatprep.subr.mxu0 %v366
    %606 = vmatpush1.msra.mxu0 %v365
    %607 = vmatprep.subr.mxu0 %v370
    %608 = vmatpush1.msra.mxu0 %v369
    %609 = vmatprep.subr.mxu0 %v374
    %610 = vmatpush1.msra.mxu0 %v373
    %611 = vmatprep.subr.mxu0 %v378
    %612 = vmatpush1.msra.mxu0 %v377
    %613 = vmatprep.subr.mxu0 %v382
    %614 = vmatpush1.msra.mxu0 %v381
    %615 = vmatprep.subr.mxu0 %v386
    %616 = vmatpush1.msra.mxu0 %v385
    %617 = vmatprep.subr.mxu0 %v390
    %618 = vmatpush1.msra.mxu0 %v389
    %619 = vmatprep.subr.mxu0 %v394
    %620 = vmatpush1.msra.mxu0 %v393
    %621 = vmatprep.subr.mxu0 0.0
    %622 = vmatpush1.msra.mxu0 0.0
    %623 = vmatprep.subr.mxu0 0.0
    %624 = vmatpush1.msra.mxu0 0.0
    %625 = vmatprep.subr.mxu0 0.0
    %626 = vmatpush1.msra.mxu0 0.0
    %627 = vmatprep.subr.mxu0 0.0
    %628 = vmatpush1.msra.mxu0 0.0
    %629 = vmatprep.subr.mxu0 0.0
    %630 = vmatpush1.msra.mxu0 0.0
    %631 = vmatprep.subr.mxu0 0.0
    %632 = vmatpush1.msra.mxu0 0.0
    %633 = vmatprep.subr.mxu0 0.0
    %634 = vmatpush1.msra.mxu0 0.0
    %635 = vmatprep.subr.mxu0 0.0
    %636 = vmatpush1.msra.mxu0 0.0
    %637 = vmatprep.subr.mxu0 0.0
    %638 = vmatpush1.msra.mxu0 0.0
    %639 = vmatprep.subr.mxu0 0.0
    %640 = vmatpush1.msra.mxu0 0.0
    %641 = vmatprep.subr.mxu0 0.0
    %642 = vmatpush1.msra.mxu0 0.0
    %643 = vmatprep.subr.mxu0 0.0
    %644 = vmatpush1.msra.mxu0 0.0
    %645 = vmatprep.subr.mxu0 0.0
    %646 = vmatpush1.msra.mxu0 0.0
    %647 = vmatprep.subr.mxu0 0.0
    %648 = vmatpush1.msra.mxu0 0.0
    %649 = vmatprep.subr.mxu0 0.0
    %650 = vmatpush1.msra.mxu0 0.0
    %651 = vmatprep.subr.mxu0 0.0
    %652 = vmatpush1.msra.mxu0 0.0
    %653 = vmatprep.subr.mxu0 0.0
    %654 = vmatpush1.msra.mxu0 0.0
    %655 = vmatprep.subr.mxu0 0.0
    %656 = vmatpush1.msra.mxu0 0.0
    %657 = vmatprep.subr.mxu0 0.0
    %658 = vmatpush1.msra.mxu0 0.0
    %659 = vmatprep.subr.mxu0 0.0
    %660 = vmatpush1.msra.mxu0 0.0
    %661 = vmatprep.subr.mxu0 0.0
    %662 = vmatpush1.msra.mxu0 0.0
    %663 = vmatprep.subr.mxu0 0.0
    %664 = vmatpush1.msra.mxu0 0.0
    %665 = vmatprep.subr.mxu0 0.0
    %666 = vmatpush1.msra.mxu0 0.0
    %667 = vmatprep.subr.mxu0 0.0
    %668 = vmatpush1.msra.mxu0 0.0
    %669 = vmatprep.mubr.f32.mxu0 0.0
    %670 = vmatmul.mubr.f32.gmra.mrb[0].mxu0 %v397
    %v671 = vpop.f32.mrb[0].mxu0
    %v672 = vadd.f32 0.0, %v671
    %v673 = vpop.f32.mrb[0].mxu0
    %v674 = vadd.f32 0.0, %v673
    %675 = vmatprep.mubr.f32.mxu0 0.0
    %676 = vmatmul.mubr.f32.gmra.mrb[0].mxu0 %v400
    %v677 = vpop.f32.mrb[0].mxu0
    %v678 = vadd.f32 0.0, %v677
    %v679 = vpop.f32.mrb[0].mxu0
    %v680 = vadd.f32 0.0, %v679
    %681 = vmatprep.mubr.f32.mxu0 0.0
    %682 = vmatmul.mubr.f32.gmra.mrb[0].mxu0 %v403
    %v683 = vpop.f32.mrb[0].mxu0
    %v684 = vadd.f32 0.0, %v683
    %v685 = vpop.f32.mrb[0].mxu0
    %v686 = vadd.f32 0.0, %v685
    %687 = vmatprep.mubr.f32.mxu0 0.0
    %688 = vmatmul.mubr.f32.gmra.mrb[0].mxu0 %v406
    %v689 = vpop.f32.mrb[0].mxu0
    %v690 = vadd.f32 0.0, %v689
    %v691 = vpop.f32.mrb[0].mxu0
    %v692 = vadd.f32 0.0, %v691
    %693 = vmatprep.mubr.f32.mxu0 0.0
    %694 = vmatmul.mubr.f32.gmra.mrb[0].mxu0 %v409
    %v695 = vpop.f32.mrb[0].mxu0
    %v696 = vadd.f32 0.0, %v695
    %v697 = vpop.f32.mrb[0].mxu0
    %v698 = vadd.f32 0.0, %v697
    %699 = vmatprep.mubr.f32.mxu0 0.0
    %700 = vmatmul.mubr.f32.gmra.mrb[0].mxu0 %v412
    %v701 = vpop.f32.mrb[0].mxu0
    %v702 = vadd.f32 0.0, %v701
    %v703 = vpop.f32.mrb[0].mxu0
    %v704 = vadd.f32 0.0, %v703
    %705 = vmatprep.mubr.f32.mxu0 0.0
    %706 = vmatmul.mubr.f32.gmra.mrb[0].mxu0 %v415
    %v707 = vpop.f32.mrb[0].mxu0
    %v708 = vadd.f32 0.0, %v707
    %v709 = vpop.f32.mrb[0].mxu0
    %v710 = vadd.f32 0.0, %v709
    %711 = vmatprep.mubr.f32.mxu0 0.0
    %712 = vmatmul.mubr.f32.gmra.mrb[0].mxu0 %v418
    %v713 = vpop.f32.mrb[0].mxu0
    %v714 = vadd.f32 0.0, %v713
    %v715 = vpop.f32.mrb[0].mxu0
    %v716 = vadd.f32 0.0, %v715
    %717 = vmatprep.mubr.f32.mxu0 0.0
    %718 = vmatmul.mubr.f32.gmra.mrb[0].mxu0 %v421
    %v719 = vpop.f32.mrb[0].mxu0
    %v720 = vadd.f32 0.0, %v719
    %v721 = vpop.f32.mrb[0].mxu0
    %v722 = vadd.f32 0.0, %v721
    %723 = vmatprep.mubr.f32.mxu0 0.0
    %724 = vmatmul.mubr.f32.gmra.mrb[0].mxu0 %v424
    %v725 = vpop.f32.mrb[0].mxu0
    %v726 = vadd.f32 0.0, %v725
    %v727 = vpop.f32.mrb[0].mxu0
    %v728 = vadd.f32 0.0, %v727
    %729 = vmatprep.mubr.f32.mxu0 0.0
    %730 = vmatmul.mubr.f32.gmra.mrb[0].mxu0 %v427
    %v731 = vpop.f32.mrb[0].mxu0
    %v732 = vadd.f32 0.0, %v731
    %v733 = vpop.f32.mrb[0].mxu0
    %v734 = vadd.f32 0.0, %v733
    %735 = vmatprep.mubr.f32.mxu0 0.0
    %736 = vmatmul.mubr.f32.gmra.mrb[0].mxu0 %v430
    %v737 = vpop.f32.mrb[0].mxu0
    %v738 = vadd.f32 0.0, %v737
    %v739 = vpop.f32.mrb[0].mxu0
    %v740 = vadd.f32 0.0, %v739
    %741 = vmatprep.mubr.f32.mxu0 0.0
    %742 = vmatmul.mubr.f32.gmra.mrb[0].mxu0 %v433
    %v743 = vpop.f32.mrb[0].mxu0
    %v744 = vadd.f32 0.0, %v743
    %v745 = vpop.f32.mrb[0].mxu0
    %v746 = vadd.f32 0.0, %v745
    %747 = vmatprep.mubr.f32.mxu0 0.0
    %748 = vmatmul.mubr.f32.gmra.mrb[0].mxu0 %v436
    %v749 = vpop.f32.mrb[0].mxu0
    %v750 = vadd.f32 0.0, %v749
    %v751 = vpop.f32.mrb[0].mxu0
    %v752 = vadd.f32 0.0, %v751
    %753 = vmatprep.mubr.f32.mxu0 0.0
    %754 = vmatmul.mubr.f32.gmra.mrb[0].mxu0 %v439
    %v755 = vpop.f32.mrb[0].mxu0
    %v756 = vadd.f32 0.0, %v755
    %v757 = vpop.f32.mrb[0].mxu0
    %v758 = vadd.f32 0.0, %v757
    %759 = vmatprep.mubr.f32.mxu0 0.0
    %760 = vmatmul.mubr.f32.gmra.mrb[0].mxu0 %v442
    %v761 = vpop.f32.mrb[0].mxu0
    %v762 = vadd.f32 0.0, %v761
    %v763 = vpop.f32.mrb[0].mxu0
    %v764 = vadd.f32 0.0, %v763
    %765 = vdwg.mxu0
    %v766 = vld [vmem:[%s5] sm:$0xff]
    %v767 = vld [vmem:[%s5 + $0x8] sm:$0xff]
    %v768 = vld [vmem:[%s5 + $0x10] sm:$0xff]
    %v769 = vld [vmem:[%s5 + $0x18] sm:$0xff]
    %v770 = vld [vmem:[%s5 + $0x20] sm:$0xff]
    %v771 = vld [vmem:[%s5 + $0x28] sm:$0xff]
    %v772 = vld [vmem:[%s5 + $0x30] sm:$0xff]
    %v773 = vld [vmem:[%s5 + $0x38] sm:$0xff]
    %v774 = vld [vmem:[%s5 + $0x40] sm:$0xff]
    %v775 = vld [vmem:[%s5 + $0x48] sm:$0xff]
    %v776 = vld [vmem:[%s5 + $0x50] sm:$0xff]
    %v777 = vld [vmem:[%s5 + $0x58] sm:$0xff]
    %v778 = vld [vmem:[%s5 + $0x60] sm:$0xff]
    %v779 = vld [vmem:[%s5 + $0x68] sm:$0xff]
    %v780 = vld [vmem:[%s5 + $0x70] sm:$0xff]
    %v781 = vld [vmem:[%s5 + $0x78] sm:$0xff]
    %v782 = vld [vmem:[%s0] sm:$0xff]
    %v783 = vld [vmem:[%s0 + $0x8] sm:$0xff]
    %v785 = vsel %vm57, %v766, 0
    %v788 = vsel %vm57, %v767, 0
    %v791 = vsel %vm57, %v768, 0
    %v794 = vsel %vm57, %v769, 0
    %v797 = vsel %vm57, %v770, 0
    %v800 = vsel %vm57, %v771, 0
    %v803 = vsel %vm57, %v772, 0
    %v806 = vsel %vm57, %v773, 0
    %v809 = vsel %vm57, %v774, 0
    %v812 = vsel %vm57, %v775, 0
    %v815 = vsel %vm57, %v776, 0
    %v818 = vsel %vm57, %v777, 0
    %v821 = vsel %vm57, %v778, 0
    %v824 = vsel %vm57, %v779, 0
    %v827 = vsel %vm57, %v780, 0
    %v830 = vsel %vm57, %v781, 0
    %832 = vmatprep.subr.mxu0 0.0
    %833 = vmatpush1.msra.mxu0 %v782
    %834 = vmatprep.subr.mxu0 0.0
    %835 = vmatpush1.msra.mxu0 %v783
    %836 = vmatprep.subr.mxu0 0.0
    %837 = vmatpush1.msra.mxu0 0.0
    %838 = vmatprep.subr.mxu0 0.0
    %839 = vmatpush1.msra.mxu0 0.0
    %840 = vmatprep.subr.mxu0 0.0
    %841 = vmatpush1.msra.mxu0 0.0
    %842 = vmatprep.subr.mxu0 0.0
    %843 = vmatpush1.msra.mxu0 0.0
    %844 = vmatprep.subr.mxu0 0.0
    %845 = vmatpush1.msra.mxu0 0.0
    %846 = vmatprep.subr.mxu0 0.0
    %847 = vmatpush1.msra.mxu0 0.0
    %848 = vmatprep.subr.mxu0 0.0
    %849 = vmatpush1.msra.mxu0 0.0
    %850 = vmatprep.subr.mxu0 0.0
    %851 = vmatpush1.msra.mxu0 0.0
    %852 = vmatprep.subr.mxu0 0.0
    %853 = vmatpush1.msra.mxu0 0.0
    %854 = vmatprep.subr.mxu0 0.0
    %855 = vmatpush1.msra.mxu0 0.0
    %856 = vmatprep.subr.mxu0 0.0
    %857 = vmatpush1.msra.mxu0 0.0
    %858 = vmatprep.subr.mxu0 0.0
    %859 = vmatpush1.msra.mxu0 0.0
    %860 = vmatprep.subr.mxu0 0.0
    %861 = vmatpush1.msra.mxu0 0.0
    %862 = vmatprep.subr.mxu0 0.0
    %863 = vmatpush1.msra.mxu0 0.0
    %864 = vmatprep.subr.mxu0 0.0
    %865 = vmatpush1.msra.mxu0 0.0
    %866 = vmatprep.subr.mxu0 0.0
    %867 = vmatpush1.msra.mxu0 0.0
    %868 = vmatprep.subr.mxu0 0.0
    %869 = vmatpush1.msra.mxu0 0.0
    %870 = vmatprep.subr.mxu0 0.0
    %871 = vmatpush1.msra.mxu0 0.0
    %872 = vmatprep.subr.mxu0 0.0
    %873 = vmatpush1.msra.mxu0 0.0
    %874 = vmatprep.subr.mxu0 0.0
    %875 = vmatpush1.msra.mxu0 0.0
    %876 = vmatprep.subr.mxu0 0.0
    %877 = vmatpush1.msra.mxu0 0.0
    %878 = vmatprep.subr.mxu0 0.0
    %879 = vmatpush1.msra.mxu0 0.0
    %880 = vmatprep.subr.mxu0 0.0
    %881 = vmatpush1.msra.mxu0 0.0
    %882 = vmatprep.subr.mxu0 0.0
    %883 = vmatpush1.msra.mxu0 0.0
    %884 = vmatprep.subr.mxu0 0.0
    %885 = vmatpush1.msra.mxu0 0.0
    %886 = vmatprep.subr.mxu0 0.0
    %887 = vmatpush1.msra.mxu0 0.0
    %888 = vmatprep.subr.mxu0 0.0
    %889 = vmatpush1.msra.mxu0 0.0
    %890 = vmatprep.subr.mxu0 0.0
    %891 = vmatpush1.msra.mxu0 0.0
    %892 = vmatprep.subr.mxu0 0.0
    %893 = vmatpush1.msra.mxu0 0.0
    %894 = vmatprep.subr.mxu0 0.0
    %895 = vmatpush1.msra.mxu0 0.0
    %896 = vmatprep.mubr.f32.mxu0 0.0
    %897 = vmatmul.mubr.f32.gmra.mrb[0].mxu0 %v785
    %v898 = vpop.f32.mrb[0].mxu0
    %v899 = vadd.f32 0.0, %v898
    %v900 = vpop.f32.mrb[0].mxu0
    %901 = vmatprep.mubr.f32.mxu0 0.0
    %902 = vmatmul.mubr.f32.gmra.mrb[0].mxu0 %v788
    %v903 = vpop.f32.mrb[0].mxu0
    %v904 = vadd.f32 0.0, %v903
    %v905 = vpop.f32.mrb[0].mxu0
    %906 = vmatprep.mubr.f32.mxu0 0.0
    %907 = vmatmul.mubr.f32.gmra.mrb[0].mxu0 %v791
    %v908 = vpop.f32.mrb[0].mxu0
    %v909 = vadd.f32 0.0, %v908
    %v910 = vpop.f32.mrb[0].mxu0
    %911 = vmatprep.mubr.f32.mxu0 0.0
    %912 = vmatmul.mubr.f32.gmra.mrb[0].mxu0 %v794
    %v913 = vpop.f32.mrb[0].mxu0
    %v914 = vadd.f32 0.0, %v913
    %v915 = vpop.f32.mrb[0].mxu0
    %916 = vmatprep.mubr.f32.mxu0 0.0
    %917 = vmatmul.mubr.f32.gmra.mrb[0].mxu0 %v797
    %v918 = vpop.f32.mrb[0].mxu0
    %v919 = vadd.f32 0.0, %v918
    %v920 = vpop.f32.mrb[0].mxu0
    %921 = vmatprep.mubr.f32.mxu0 0.0
    %922 = vmatmul.mubr.f32.gmra.mrb[0].mxu0 %v800
    %v923 = vpop.f32.mrb[0].mxu0
    %v924 = vadd.f32 0.0, %v923
    %v925 = vpop.f32.mrb[0].mxu0
    %926 = vmatprep.mubr.f32.mxu0 0.0
    %927 = vmatmul.mubr.f32.gmra.mrb[0].mxu0 %v803
    %v928 = vpop.f32.mrb[0].mxu0
    %v929 = vadd.f32 0.0, %v928
    %v930 = vpop.f32.mrb[0].mxu0
    %931 = vmatprep.mubr.f32.mxu0 0.0
    %932 = vmatmul.mubr.f32.gmra.mrb[0].mxu0 %v806
    %v933 = vpop.f32.mrb[0].mxu0
    %v934 = vadd.f32 0.0, %v933
    %v935 = vpop.f32.mrb[0].mxu0
    %936 = vmatprep.mubr.f32.mxu0 0.0
    %937 = vmatmul.mubr.f32.gmra.mrb[0].mxu0 %v809
    %v938 = vpop.f32.mrb[0].mxu0
    %v939 = vadd.f32 0.0, %v938
    %v940 = vpop.f32.mrb[0].mxu0
    %941 = vmatprep.mubr.f32.mxu0 0.0
    %942 = vmatmul.mubr.f32.gmra.mrb[0].mxu0 %v812
    %v943 = vpop.f32.mrb[0].mxu0
    %v944 = vadd.f32 0.0, %v943
    %v945 = vpop.f32.mrb[0].mxu0
    %946 = vmatprep.mubr.f32.mxu0 0.0
    %947 = vmatmul.mubr.f32.gmra.mrb[0].mxu0 %v815
    %v948 = vpop.f32.mrb[0].mxu0
    %v949 = vadd.f32 0.0, %v948
    %v950 = vpop.f32.mrb[0].mxu0
    %951 = vmatprep.mubr.f32.mxu0 0.0
    %952 = vmatmul.mubr.f32.gmra.mrb[0].mxu0 %v818
    %v953 = vpop.f32.mrb[0].mxu0
    %v954 = vadd.f32 0.0, %v953
    %v955 = vpop.f32.mrb[0].mxu0
    %956 = vmatprep.mubr.f32.mxu0 0.0
    %957 = vmatmul.mubr.f32.gmra.mrb[0].mxu0 %v821
    %v958 = vpop.f32.mrb[0].mxu0
    %v959 = vadd.f32 0.0, %v958
    %v960 = vpop.f32.mrb[0].mxu0
    %961 = vmatprep.mubr.f32.mxu0 0.0
    %962 = vmatmul.mubr.f32.gmra.mrb[0].mxu0 %v824
    %v963 = vpop.f32.mrb[0].mxu0
    %v964 = vadd.f32 0.0, %v963
    %v965 = vpop.f32.mrb[0].mxu0
    %966 = vmatprep.mubr.f32.mxu0 0.0
    %967 = vmatmul.mubr.f32.gmra.mrb[0].mxu0 %v827
    %v968 = vpop.f32.mrb[0].mxu0
    %v969 = vadd.f32 0.0, %v968
    %v970 = vpop.f32.mrb[0].mxu0
    %971 = vmatprep.mubr.f32.mxu0 0.0
    %972 = vmatmul.mubr.f32.gmra.mrb[0].mxu0 %v830
    %v973 = vpop.f32.mrb[0].mxu0
    %v974 = vadd.f32 0.0, %v973
    %v975 = vpop.f32.mrb[0].mxu0
    %976 = vdwg.mxu0
    %v977 = vld [vmem:[%s7] sm:$0xff]
    %vm978 = vcmask 64512
    %v980 = vsel %vm978, %v899, 0
    %v983 = vsel %vm978, %v904, 0
    %v986 = vsel %vm978, %v909, 0
    %v989 = vsel %vm978, %v914, 0
    %v992 = vsel %vm978, %v919, 0
    %v995 = vsel %vm978, %v924, 0
    %v998 = vsel %vm978, %v929, 0
    %v1001 = vsel %vm978, %v934, 0
    %v1004 = vsel %vm978, %v939, 0
    %v1007 = vsel %vm978, %v944, 0
    %v1010 = vsel %vm978, %v949, 0
    %v1013 = vsel %vm978, %v954, 0
    %v1016 = vsel %vm978, %v959, 0
    %v1019 = vsel %vm978, %v964, 0
    %v1022 = vsel %vm978, %v969, 0
    %v1025 = vsel %vm978, %v974, 0
    %1027 = vmatprep.subr.mxu0 0.0
    %1028 = vmatpush1.msra.mxu0 %v977
    %1029 = vmatprep.subr.mxu0 0.0
    %1030 = vmatpush1.msra.mxu0 0.0
    %1031 = vmatprep.subr.mxu0 0.0
    %1032 = vmatpush1.msra.mxu0 0.0
    %1033 = vmatprep.subr.mxu0 0.0
    %1034 = vmatpush1.msra.mxu0 0.0
    %1035 = vmatprep.subr.mxu0 0.0
    %1036 = vmatpush1.msra.mxu0 0.0
    %1037 = vmatprep.subr.mxu0 0.0
    %1038 = vmatpush1.msra.mxu0 0.0
    %1039 = vmatprep.subr.mxu0 0.0
    %1040 = vmatpush1.msra.mxu0 0.0
    %1041 = vmatprep.subr.mxu0 0.0
    %1042 = vmatpush1.msra.mxu0 0.0
    %1043 = vmatprep.subr.mxu0 0.0
    %1044 = vmatpush1.msra.mxu0 0.0
    %1045 = vmatprep.subr.mxu0 0.0
    %1046 = vmatpush1.msra.mxu0 0.0
    %1047 = vmatprep.subr.mxu0 0.0
    %1048 = vmatpush1.msra.mxu0 0.0
    %1049 = vmatprep.subr.mxu0 0.0
    %1050 = vmatpush1.msra.mxu0 0.0
    %1051 = vmatprep.subr.mxu0 0.0
    %1052 = vmatpush1.msra.mxu0 0.0
    %1053 = vmatprep.subr.mxu0 0.0
    %1054 = vmatpush1.msra.mxu0 0.0
    %1055 = vmatprep.subr.mxu0 0.0
    %1056 = vmatpush1.msra.mxu0 0.0
    %1057 = vmatprep.subr.mxu0 0.0
    %1058 = vmatpush1.msra.mxu0 0.0
    %1059 = vmatprep.subr.mxu0 0.0
    %1060 = vmatpush1.msra.mxu0 0.0
    %1061 = vmatprep.subr.mxu0 0.0
    %1062 = vmatpush1.msra.mxu0 0.0
    %1063 = vmatprep.subr.mxu0 0.0
    %1064 = vmatpush1.msra.mxu0 0.0
    %1065 = vmatprep.subr.mxu0 0.0
    %1066 = vmatpush1.msra.mxu0 0.0
    %1067 = vmatprep.subr.mxu0 0.0
    %1068 = vmatpush1.msra.mxu0 0.0
    %1069 = vmatprep.subr.mxu0 0.0
    %1070 = vmatpush1.msra.mxu0 0.0
    %1071 = vmatprep.subr.mxu0 0.0
    %1072 = vmatpush1.msra.mxu0 0.0
    %1073 = vmatprep.subr.mxu0 0.0
    %1074 = vmatpush1.msra.mxu0 0.0
    %1075 = vmatprep.subr.mxu0 0.0
    %1076 = vmatpush1.msra.mxu0 0.0
    %1077 = vmatprep.subr.mxu0 0.0
    %1078 = vmatpush1.msra.mxu0 0.0
    %1079 = vmatprep.subr.mxu0 0.0
    %1080 = vmatpush1.msra.mxu0 0.0
    %1081 = vmatprep.subr.mxu0 0.0
    %1082 = vmatpush1.msra.mxu0 0.0
    %1083 = vmatprep.subr.mxu0 0.0
    %1084 = vmatpush1.msra.mxu0 0.0
    %1085 = vmatprep.subr.mxu0 0.0
    %1086 = vmatpush1.msra.mxu0 0.0
    %1087 = vmatprep.subr.mxu0 0.0
    %1088 = vmatpush1.msra.mxu0 0.0
    %1089 = vmatprep.subr.mxu0 0.0
    %1090 = vmatpush1.msra.mxu0 0.0
    %1091 = vmatprep.mubr.f32.mxu0 0.0
    %1092 = vmatmul.mubr.f32.gmra.mrb[0].mxu0 %v980
    %v1093 = vpop.f32.mrb[0].mxu0
    %v1094 = vadd.f32 0.0, %v1093
    %v1095 = vpop.f32.mrb[0].mxu0
    %1096 = vmatprep.mubr.f32.mxu0 0.0
    %1097 = vmatmul.mubr.f32.gmra.mrb[0].mxu0 %v983
    %v1098 = vpop.f32.mrb[0].mxu0
    %v1099 = vadd.f32 0.0, %v1098
    %v1100 = vpop.f32.mrb[0].mxu0
    %1101 = vmatprep.mubr.f32.mxu0 0.0
    %1102 = vmatmul.mubr.f32.gmra.mrb[0].mxu0 %v986
    %v1103 = vpop.f32.mrb[0].mxu0
    %v1104 = vadd.f32 0.0, %v1103
    %v1105 = vpop.f32.mrb[0].mxu0
    %1106 = vmatprep.mubr.f32.mxu0 0.0
    %1107 = vmatmul.mubr.f32.gmra.mrb[0].mxu0 %v989
    %v1108 = vpop.f32.mrb[0].mxu0
    %v1109 = vadd.f32 0.0, %v1108
    %v1110 = vpop.f32.mrb[0].mxu0
    %1111 = vmatprep.mubr.f32.mxu0 0.0
    %1112 = vmatmul.mubr.f32.gmra.mrb[0].mxu0 %v992
    %v1113 = vpop.f32.mrb[0].mxu0
    %v1114 = vadd.f32 0.0, %v1113
    %v1115 = vpop.f32.mrb[0].mxu0
    %1116 = vmatprep.mubr.f32.mxu0 0.0
    %1117 = vmatmul.mubr.f32.gmra.mrb[0].mxu0 %v995
    %v1118 = vpop.f32.mrb[0].mxu0
    %v1119 = vadd.f32 0.0, %v1118
    %v1120 = vpop.f32.mrb[0].mxu0
    %1121 = vmatprep.mubr.f32.mxu0 0.0
    %1122 = vmatmul.mubr.f32.gmra.mrb[0].mxu0 %v998
    %v1123 = vpop.f32.mrb[0].mxu0
    %v1124 = vadd.f32 0.0, %v1123
    %v1125 = vpop.f32.mrb[0].mxu0
    %1126 = vmatprep.mubr.f32.mxu0 0.0
    %1127 = vmatmul.mubr.f32.gmra.mrb[0].mxu0 %v1001
    %v1128 = vpop.f32.mrb[0].mxu0
    %v1129 = vadd.f32 0.0, %v1128
    %v1130 = vpop.f32.mrb[0].mxu0
    %1131 = vmatprep.mubr.f32.mxu0 0.0
    %1132 = vmatmul.mubr.f32.gmra.mrb[0].mxu0 %v1004
    %v1133 = vpop.f32.mrb[0].mxu0
    %v1134 = vadd.f32 0.0, %v1133
    %v1135 = vpop.f32.mrb[0].mxu0
    %1136 = vmatprep.mubr.f32.mxu0 0.0
    %1137 = vmatmul.mubr.f32.gmra.mrb[0].mxu0 %v1007
    %v1138 = vpop.f32.mrb[0].mxu0
    %v1139 = vadd.f32 0.0, %v1138
    %v1140 = vpop.f32.mrb[0].mxu0
    %1141 = vmatprep.mubr.f32.mxu0 0.0
    %1142 = vmatmul.mubr.f32.gmra.mrb[0].mxu0 %v1010
    %v1143 = vpop.f32.mrb[0].mxu0
    %v1144 = vadd.f32 0.0, %v1143
    %v1145 = vpop.f32.mrb[0].mxu0
    %1146 = vmatprep.mubr.f32.mxu0 0.0
    %1147 = vmatmul.mubr.f32.gmra.mrb[0].mxu0 %v1013
    %v1148 = vpop.f32.mrb[0].mxu0
    %v1149 = vadd.f32 0.0, %v1148
    %v1150 = vpop.f32.mrb[0].mxu0
    %1151 = vmatprep.mubr.f32.mxu0 0.0
    %1152 = vmatmul.mubr.f32.gmra.mrb[0].mxu0 %v1016
    %v1153 = vpop.f32.mrb[0].mxu0
    %v1154 = vadd.f32 0.0, %v1153
    %v1155 = vpop.f32.mrb[0].mxu0
    %1156 = vmatprep.mubr.f32.mxu0 0.0
    %1157 = vmatmul.mubr.f32.gmra.mrb[0].mxu0 %v1019
    %v1158 = vpop.f32.mrb[0].mxu0
    %v1159 = vadd.f32 0.0, %v1158
    %v1160 = vpop.f32.mrb[0].mxu0
    %1161 = vmatprep.mubr.f32.mxu0 0.0
    %1162 = vmatmul.mubr.f32.gmra.mrb[0].mxu0 %v1022
    %v1163 = vpop.f32.mrb[0].mxu0
    %v1164 = vadd.f32 0.0, %v1163
    %v1165 = vpop.f32.mrb[0].mxu0
    %1166 = vmatprep.mubr.f32.mxu0 0.0
    %1167 = vmatmul.mubr.f32.gmra.mrb[0].mxu0 %v1025
    %v1168 = vpop.f32.mrb[0].mxu0
    %v1169 = vadd.f32 0.0, %v1168
    %v1170 = vpop.f32.mrb[0].mxu0
    %1171 = vdwg.mxu0
    %v1172 = vld [vmem:[%s1] sm:$0xff]
    %v1173 = vld [vmem:[%s1 + $0x8] sm:$0xff]
    %v1174 = vld [vmem:[%s1 + $0x10] sm:$0xff]
    %v1175 = vld [vmem:[%s1 + $0x18] sm:$0xff]
    %v1176 = vld [vmem:[%s1 + $0x20] sm:$0xff]
    %v1177 = vld [vmem:[%s1 + $0x28] sm:$0xff]
    %v1178 = vld [vmem:[%s1 + $0x30] sm:$0xff]
    %v1179 = vld [vmem:[%s1 + $0x38] sm:$0xff]
    %v1180 = vld [vmem:[%s1 + $0x40] sm:$0xff]
    %v1181 = vld [vmem:[%s1 + $0x48] sm:$0xff]
    %v1182 = vld [vmem:[%s1 + $0x50] sm:$0xff]
    %v1183 = vld [vmem:[%s1 + $0x58] sm:$0xff]
    %v1184 = vld [vmem:[%s1 + $0x60] sm:$0xff]
    %v1185 = vld [vmem:[%s1 + $0x68] sm:$0xff]
    %v1186 = vld [vmem:[%s1 + $0x70] sm:$0xff]
    %v1187 = vld [vmem:[%s1 + $0x78] sm:$0xff]
    %v1188 = vld [vmem:[%s8] sm:$0xf]
    %vm1189 = vcmask 31744
    %v1191 = vsel %vm1189, %v1172, 0
    %v1194 = vsel %vm1189, %v1173, 0
    %v1197 = vsel %vm1189, %v1174, 0
    %v1200 = vsel %vm1189, %v1175, 0
    %v1203 = vsel %vm1189, %v1176, 0
    %v1206 = vsel %vm1189, %v1177, 0
    %v1209 = vsel %vm1189, %v1178, 0
    %v1212 = vsel %vm1189, %v1179, 0
    %v1215 = vsel %vm1189, %v1180, 0
    %v1218 = vsel %vm1189, %v1181, 0
    %v1221 = vsel %vm1189, %v1182, 0
    %v1224 = vsel %vm1189, %v1183, 0
    %v1227 = vsel %vm1189, %v1184, 0
    %v1230 = vsel %vm1189, %v1185, 0
    %v1233 = vsel %vm1189, %v1186, 0
    %v1236 = vsel %vm1189, %v1187, 0
    %vm1238 = vcmask 1043456
    %v1240 = vsel %vm1238, %v1188, 0
    %1242 = vmatprep.subr.mxu0 0.0
    %1243 = vmatpush1.msra.mxu0 %v1240
    %1244 = vmatprep.subr.mxu0 0.0
    %1245 = vmatpush1.msra.mxu0 0.0
    %1246 = vmatprep.subr.mxu0 0.0
    %1247 = vmatpush1.msra.mxu0 0.0
    %1248 = vmatprep.subr.mxu0 0.0
    %1249 = vmatpush1.msra.mxu0 0.0
    %1250 = vmatprep.subr.mxu0 0.0
    %1251 = vmatpush1.msra.mxu0 0.0
    %1252 = vmatprep.subr.mxu0 0.0
    %1253 = vmatpush1.msra.mxu0 0.0
    %1254 = vmatprep.subr.mxu0 0.0
    %1255 = vmatpush1.msra.mxu0 0.0
    %1256 = vmatprep.subr.mxu0 0.0
    %1257 = vmatpush1.msra.mxu0 0.0
    %1258 = vmatprep.subr.mxu0 0.0
    %1259 = vmatpush1.msra.mxu0 0.0
    %1260 = vmatprep.subr.mxu0 0.0
    %1261 = vmatpush1.msra.mxu0 0.0
    %1262 = vmatprep.subr.mxu0 0.0
    %1263 = vmatpush1.msra.mxu0 0.0
    %1264 = vmatprep.subr.mxu0 0.0
    %1265 = vmatpush1.msra.mxu0 0.0
    %1266 = vmatprep.subr.mxu0 0.0
    %1267 = vmatpush1.msra.mxu0 0.0
    %1268 = vmatprep.subr.mxu0 0.0
    %1269 = vmatpush1.msra.mxu0 0.0
    %1270 = vmatprep.subr.mxu0 0.0
    %1271 = vmatpush1.msra.mxu0 0.0
    %1272 = vmatprep.subr.mxu0 0.0
    %1273 = vmatpush1.msra.mxu0 0.0
    %1274 = vmatprep.subr.mxu0 0.0
    %1275 = vmatpush1.msra.mxu0 0.0
    %1276 = vmatprep.subr.mxu0 0.0
    %1277 = vmatpush1.msra.mxu0 0.0
    %1278 = vmatprep.subr.mxu0 0.0
    %1279 = vmatpush1.msra.mxu0 0.0
    %1280 = vmatprep.subr.mxu0 0.0
    %1281 = vmatpush1.msra.mxu0 0.0
    %1282 = vmatprep.subr.mxu0 0.0
    %1283 = vmatpush1.msra.mxu0 0.0
    %1284 = vmatprep.subr.mxu0 0.0
    %1285 = vmatpush1.msra.mxu0 0.0
    %1286 = vmatprep.subr.mxu0 0.0
    %1287 = vmatpush1.msra.mxu0 0.0
    %1288 = vmatprep.subr.mxu0 0.0
    %1289 = vmatpush1.msra.mxu0 0.0
    %1290 = vmatprep.subr.mxu0 0.0
    %1291 = vmatpush1.msra.mxu0 0.0
    %1292 = vmatprep.subr.mxu0 0.0
    %1293 = vmatpush1.msra.mxu0 0.0
    %1294 = vmatprep.subr.mxu0 0.0
    %1295 = vmatpush1.msra.mxu0 0.0
    %1296 = vmatprep.subr.mxu0 0.0
    %1297 = vmatpush1.msra.mxu0 0.0
    %1298 = vmatprep.subr.mxu0 0.0
    %1299 = vmatpush1.msra.mxu0 0.0
    %1300 = vmatprep.subr.mxu0 0.0
    %1301 = vmatpush1.msra.mxu0 0.0
    %1302 = vmatprep.subr.mxu0 0.0
    %1303 = vmatpush1.msra.mxu0 0.0
    %1304 = vmatprep.subr.mxu0 0.0
    %1305 = vmatpush1.msra.mxu0 0.0
    %1306 = vmatprep.mubr.f32.mxu0 0.0
    %1307 = vmatmul.mubr.f32.gmra.mrb[0].mxu0 %v1191
    %v1308 = vpop.f32.mrb[0].mxu0
    %v1309 = vadd.f32 0.0, %v1308
    %v1310 = vpop.f32.mrb[0].mxu0
    %1311 = vmatprep.mubr.f32.mxu0 0.0
    %1312 = vmatmul.mubr.f32.gmra.mrb[0].mxu0 %v1194
    %v1313 = vpop.f32.mrb[0].mxu0
    %v1314 = vadd.f32 0.0, %v1313
    %v1315 = vpop.f32.mrb[0].mxu0
    %1316 = vmatprep.mubr.f32.mxu0 0.0
    %1317 = vmatmul.mubr.f32.gmra.mrb[0].mxu0 %v1197
    %v1318 = vpop.f32.mrb[0].mxu0
    %v1319 = vadd.f32 0.0, %v1318
    %v1320 = vpop.f32.mrb[0].mxu0
    %1321 = vmatprep.mubr.f32.mxu0 0.0
    %1322 = vmatmul.mubr.f32.gmra.mrb[0].mxu0 %v1200
    %v1323 = vpop.f32.mrb[0].mxu0
    %v1324 = vadd.f32 0.0, %v1323
    %v1325 = vpop.f32.mrb[0].mxu0
    %1326 = vmatprep.mubr.f32.mxu0 0.0
    %1327 = vmatmul.mubr.f32.gmra.mrb[0].mxu0 %v1203
    %v1328 = vpop.f32.mrb[0].mxu0
    %v1329 = vadd.f32 0.0, %v1328
    %v1330 = vpop.f32.mrb[0].mxu0
    %1331 = vmatprep.mubr.f32.mxu0 0.0
    %1332 = vmatmul.mubr.f32.gmra.mrb[0].mxu0 %v1206
    %v1333 = vpop.f32.mrb[0].mxu0
    %v1334 = vadd.f32 0.0, %v1333
    %v1335 = vpop.f32.mrb[0].mxu0
    %1336 = vmatprep.mubr.f32.mxu0 0.0
    %1337 = vmatmul.mubr.f32.gmra.mrb[0].mxu0 %v1209
    %v1338 = vpop.f32.mrb[0].mxu0
    %v1339 = vadd.f32 0.0, %v1338
    %v1340 = vpop.f32.mrb[0].mxu0
    %1341 = vmatprep.mubr.f32.mxu0 0.0
    %1342 = vmatmul.mubr.f32.gmra.mrb[0].mxu0 %v1212
    %v1343 = vpop.f32.mrb[0].mxu0
    %v1344 = vadd.f32 0.0, %v1343
    %v1345 = vpop.f32.mrb[0].mxu0
    %1346 = vmatprep.mubr.f32.mxu0 0.0
    %1347 = vmatmul.mubr.f32.gmra.mrb[0].mxu0 %v1215
    %v1348 = vpop.f32.mrb[0].mxu0
    %v1349 = vadd.f32 0.0, %v1348
    %v1350 = vpop.f32.mrb[0].mxu0
    %1351 = vmatprep.mubr.f32.mxu0 0.0
    %1352 = vmatmul.mubr.f32.gmra.mrb[0].mxu0 %v1218
    %v1353 = vpop.f32.mrb[0].mxu0
    %v1354 = vadd.f32 0.0, %v1353
    %v1355 = vpop.f32.mrb[0].mxu0
    %1356 = vmatprep.mubr.f32.mxu0 0.0
    %1357 = vmatmul.mubr.f32.gmra.mrb[0].mxu0 %v1221
    %v1358 = vpop.f32.mrb[0].mxu0
    %v1359 = vadd.f32 0.0, %v1358
    %v1360 = vpop.f32.mrb[0].mxu0
    %1361 = vmatprep.mubr.f32.mxu0 0.0
    %1362 = vmatmul.mubr.f32.gmra.mrb[0].mxu0 %v1224
    %v1363 = vpop.f32.mrb[0].mxu0
    %v1364 = vadd.f32 0.0, %v1363
    %v1365 = vpop.f32.mrb[0].mxu0
    %1366 = vmatprep.mubr.f32.mxu0 0.0
    %1367 = vmatmul.mubr.f32.gmra.mrb[0].mxu0 %v1227
    %v1368 = vpop.f32.mrb[0].mxu0
    %v1369 = vadd.f32 0.0, %v1368
    %v1370 = vpop.f32.mrb[0].mxu0
    %1371 = vmatprep.mubr.f32.mxu0 0.0
    %1372 = vmatmul.mubr.f32.gmra.mrb[0].mxu0 %v1230
    %v1373 = vpop.f32.mrb[0].mxu0
    %v1374 = vadd.f32 0.0, %v1373
    %v1375 = vpop.f32.mrb[0].mxu0
    %1376 = vmatprep.mubr.f32.mxu0 0.0
    %1377 = vmatmul.mubr.f32.gmra.mrb[0].mxu0 %v1233
    %v1378 = vpop.f32.mrb[0].mxu0
    %v1379 = vadd.f32 0.0, %v1378
    %v1380 = vpop.f32.mrb[0].mxu0
    %1381 = vmatprep.mubr.f32.mxu0 0.0
    %1382 = vmatmul.mubr.f32.gmra.mrb[0].mxu0 %v1236
    %v1383 = vpop.f32.mrb[0].mxu0
    %v1384 = vadd.f32 0.0, %v1383
    %v1385 = vpop.f32.mrb[0].mxu0
    %1386 = vdwg.mxu0
    %v1387 = vmul.f32 %v1094, %v1309
    %v1388 = vmul.f32 %v1099, %v1314
    %v1389 = vmul.f32 %v1104, %v1319
    %v1390 = vmul.f32 %v1109, %v1324
    %v1391 = vmul.f32 %v1114, %v1329
    %v1392 = vmul.f32 %v1119, %v1334
    %v1393 = vmul.f32 %v1124, %v1339
    %v1394 = vmul.f32 %v1129, %v1344
    %v1395 = vmul.f32 %v1134, %v1349
    %v1396 = vmul.f32 %v1139, %v1354
    %v1397 = vmul.f32 %v1144, %v1359
    %v1398 = vmul.f32 %v1149, %v1364
    %v1399 = vmul.f32 %v1154, %v1369
    %v1400 = vmul.f32 %v1159, %v1374
    %v1401 = vmul.f32 %v1164, %v1379
    %v1402 = vmul.f32 %v1169, %v1384
    %v1403 = vld [vmem:[%s9] sm:$0xff]
    %v1404 = vld [vmem:[%s9 + $0x8] sm:$0xff]
    %v1405 = vld [vmem:[%s9 + $0x10] sm:$0xff]
    %v1406 = vld [vmem:[%s9 + $0x18] sm:$0xff]
    %v1407 = vld [vmem:[%s9 + $0x20] sm:$0xff]
    %v1408 = vld [vmem:[%s9 + $0x28] sm:$0xff]
    %v1409 = vld [vmem:[%s9 + $0x30] sm:$0xff]
    %v1410 = vld [vmem:[%s9 + $0x38] sm:$0xff]
    %v1411 = vld [vmem:[%s9 + $0x40] sm:$0xff]
    %v1412 = vld [vmem:[%s9 + $0x48] sm:$0xff]
    %v1413 = vld [vmem:[%s9 + $0x50] sm:$0xff]
    %v1414 = vld [vmem:[%s9 + $0x58] sm:$0xff]
    %v1415 = vld [vmem:[%s9 + $0x60] sm:$0xff]
    %v1416 = vld [vmem:[%s9 + $0x68] sm:$0xff]
    %v1417 = vld [vmem:[%s9 + $0x70] sm:$0xff]
    %v1418 = vld [vmem:[%s9 + $0x78] sm:$0xff]
    %vm1419 = vcmask 261120
    %v1421 = vsel %vm1419, %v1387, 0
    %v1424 = vsel %vm1419, %v1388, 0
    %v1427 = vsel %vm1419, %v1389, 0
    %v1430 = vsel %vm1419, %v1390, 0
    %v1433 = vsel %vm1419, %v1391, 0
    %v1436 = vsel %vm1419, %v1392, 0
    %v1439 = vsel %vm1419, %v1393, 0
    %v1442 = vsel %vm1419, %v1394, 0
    %v1445 = vsel %vm1419, %v1395, 0
    %v1448 = vsel %vm1419, %v1396, 0
    %v1451 = vsel %vm1419, %v1397, 0
    %v1454 = vsel %vm1419, %v1398, 0
    %v1457 = vsel %vm1419, %v1399, 0
    %v1460 = vsel %vm1419, %v1400, 0
    %v1463 = vsel %vm1419, %v1401, 0
    %v1466 = vsel %vm1419, %v1402, 0
    %1468 = vmatprep.subr.mxu0 %v1404
    %1469 = vmatpush1.msra.mxu0 %v1403
    %1470 = vmatprep.subr.mxu0 %v1408
    %1471 = vmatpush1.msra.mxu0 %v1407
    %1472 = vmatprep.subr.mxu0 %v1412
    %1473 = vmatpush1.msra.mxu0 %v1411
    %1474 = vmatprep.subr.mxu0 %v1416
    %1475 = vmatpush1.msra.mxu0 %v1415
    %1476 = vmatprep.subr.mxu0 0.0
    %1477 = vmatpush1.msra.mxu0 0.0
    %1478 = vmatprep.subr.mxu0 0.0
    %1479 = vmatpush1.msra.mxu0 0.0
    %1480 = vmatprep.subr.mxu0 0.0
    %1481 = vmatpush1.msra.mxu0 0.0
    %1482 = vmatprep.subr.mxu0 0.0
    %1483 = vmatpush1.msra.mxu0 0.0
    %1484 = vmatprep.subr.mxu0 0.0
    %1485 = vmatpush1.msra.mxu0 0.0
    %1486 = vmatprep.subr.mxu0 0.0
    %1487 = vmatpush1.msra.mxu0 0.0
    %1488 = vmatprep.subr.mxu0 0.0
    %1489 = vmatpush1.msra.mxu0 0.0
    %1490 = vmatprep.subr.mxu0 0.0
    %1491 = vmatpush1.msra.mxu0 0.0
    %1492 = vmatprep.subr.mxu0 0.0
    %1493 = vmatpush1.msra.mxu0 0.0
    %1494 = vmatprep.subr.mxu0 0.0
    %1495 = vmatpush1.msra.mxu0 0.0
    %1496 = vmatprep.subr.mxu0 0.0
    %1497 = vmatpush1.msra.mxu0 0.0
    %1498 = vmatprep.subr.mxu0 0.0
    %1499 = vmatpush1.msra.mxu0 0.0
    %1500 = vmatprep.subr.mxu0 0.0
    %1501 = vmatpush1.msra.mxu0 0.0
    %1502 = vmatprep.subr.mxu0 0.0
    %1503 = vmatpush1.msra.mxu0 0.0
    %1504 = vmatprep.subr.mxu0 0.0
    %1505 = vmatpush1.msra.mxu0 0.0
    %1506 = vmatprep.subr.mxu0 0.0
    %1507 = vmatpush1.msra.mxu0 0.0
    %1508 = vmatprep.subr.mxu0 0.0
    %1509 = vmatpush1.msra.mxu0 0.0
    %1510 = vmatprep.subr.mxu0 0.0
    %1511 = vmatpush1.msra.mxu0 0.0
    %1512 = vmatprep.subr.mxu0 0.0
    %1513 = vmatpush1.msra.mxu0 0.0
    %1514 = vmatprep.subr.mxu0 0.0
    %1515 = vmatpush1.msra.mxu0 0.0
    %1516 = vmatprep.subr.mxu0 0.0
    %1517 = vmatpush1.msra.mxu0 0.0
    %1518 = vmatprep.subr.mxu0 0.0
    %1519 = vmatpush1.msra.mxu0 0.0
    %1520 = vmatprep.subr.mxu0 0.0
    %1521 = vmatpush1.msra.mxu0 0.0
    %1522 = vmatprep.subr.mxu0 0.0
    %1523 = vmatpush1.msra.mxu0 0.0
    %1524 = vmatprep.subr.mxu0 0.0
    %1525 = vmatpush1.msra.mxu0 0.0
    %1526 = vmatprep.subr.mxu0 0.0
    %1527 = vmatpush1.msra.mxu0 0.0
    %1528 = vmatprep.subr.mxu0 0.0
    %1529 = vmatpush1.msra.mxu0 0.0
    %1530 = vmatprep.subr.mxu0 0.0
    %1531 = vmatpush1.msra.mxu0 0.0
    %1532 = vmatprep.mubr.f32.mxu0 0.0
    %1533 = vmatmul.mubr.f32.gmra.mrb[0].mxu0 %v1421
    %v1534 = vpop.f32.mrb[0].mxu0
    %v1535 = vadd.f32 0.0, %v1534
    %v1536 = vpop.f32.mrb[0].mxu0
    %v1537 = vadd.f32 0.0, %v1536
    %1538 = vmatprep.mubr.f32.mxu0 0.0
    %1539 = vmatmul.mubr.f32.gmra.mrb[0].mxu0 %v1424
    %v1540 = vpop.f32.mrb[0].mxu0
    %v1541 = vadd.f32 0.0, %v1540
    %v1542 = vpop.f32.mrb[0].mxu0
    %v1543 = vadd.f32 0.0, %v1542
    %1544 = vmatprep.mubr.f32.mxu0 0.0
    %1545 = vmatmul.mubr.f32.gmra.mrb[0].mxu0 %v1427
    %v1546 = vpop.f32.mrb[0].mxu0
    %v1547 = vadd.f32 0.0, %v1546
    %v1548 = vpop.f32.mrb[0].mxu0
    %v1549 = vadd.f32 0.0, %v1548
    %1550 = vmatprep.mubr.f32.mxu0 0.0
    %1551 = vmatmul.mubr.f32.gmra.mrb[0].mxu0 %v1430
    %v1552 = vpop.f32.mrb[0].mxu0
    %v1553 = vadd.f32 0.0, %v1552
    %v1554 = vpop.f32.mrb[0].mxu0
    %v1555 = vadd.f32 0.0, %v1554
    %1556 = vmatprep.mubr.f32.mxu0 0.0
    %1557 = vmatmul.mubr.f32.gmra.mrb[0].mxu0 %v1433
    %v1558 = vpop.f32.mrb[0].mxu0
    %v1559 = vadd.f32 0.0, %v1558
    %v1560 = vpop.f32.mrb[0].mxu0
    %v1561 = vadd.f32 0.0, %v1560
    %1562 = vmatprep.mubr.f32.mxu0 0.0
    %1563 = vmatmul.mubr.f32.gmra.mrb[0].mxu0 %v1436
    %v1564 = vpop.f32.mrb[0].mxu0
    %v1565 = vadd.f32 0.0, %v1564
    %v1566 = vpop.f32.mrb[0].mxu0
    %v1567 = vadd.f32 0.0, %v1566
    %1568 = vmatprep.mubr.f32.mxu0 0.0
    %1569 = vmatmul.mubr.f32.gmra.mrb[0].mxu0 %v1439
    %v1570 = vpop.f32.mrb[0].mxu0
    %v1571 = vadd.f32 0.0, %v1570
    %v1572 = vpop.f32.mrb[0].mxu0
    %v1573 = vadd.f32 0.0, %v1572
    %1574 = vmatprep.mubr.f32.mxu0 0.0
    %1575 = vmatmul.mubr.f32.gmra.mrb[0].mxu0 %v1442
    %v1576 = vpop.f32.mrb[0].mxu0
    %v1577 = vadd.f32 0.0, %v1576
    %v1578 = vpop.f32.mrb[0].mxu0
    %v1579 = vadd.f32 0.0, %v1578
    %1580 = vmatprep.mubr.f32.mxu0 0.0
    %1581 = vmatmul.mubr.f32.gmra.mrb[0].mxu0 %v1445
    %v1582 = vpop.f32.mrb[0].mxu0
    %v1583 = vadd.f32 0.0, %v1582
    %v1584 = vpop.f32.mrb[0].mxu0
    %v1585 = vadd.f32 0.0, %v1584
    %1586 = vmatprep.mubr.f32.mxu0 0.0
    %1587 = vmatmul.mubr.f32.gmra.mrb[0].mxu0 %v1448
    %v1588 = vpop.f32.mrb[0].mxu0
    %v1589 = vadd.f32 0.0, %v1588
    %v1590 = vpop.f32.mrb[0].mxu0
    %v1591 = vadd.f32 0.0, %v1590
    %1592 = vmatprep.mubr.f32.mxu0 0.0
    %1593 = vmatmul.mubr.f32.gmra.mrb[0].mxu0 %v1451
    %v1594 = vpop.f32.mrb[0].mxu0
    %v1595 = vadd.f32 0.0, %v1594
    %v1596 = vpop.f32.mrb[0].mxu0
    %v1597 = vadd.f32 0.0, %v1596
    %1598 = vmatprep.mubr.f32.mxu0 0.0
    %1599 = vmatmul.mubr.f32.gmra.mrb[0].mxu0 %v1454
    %v1600 = vpop.f32.mrb[0].mxu0
    %v1601 = vadd.f32 0.0, %v1600
    %v1602 = vpop.f32.mrb[0].mxu0
    %v1603 = vadd.f32 0.0, %v1602
    %1604 = vmatprep.mubr.f32.mxu0 0.0
    %1605 = vmatmul.mubr.f32.gmra.mrb[0].mxu0 %v1457
    %v1606 = vpop.f32.mrb[0].mxu0
    %v1607 = vadd.f32 0.0, %v1606
    %v1608 = vpop.f32.mrb[0].mxu0
    %v1609 = vadd.f32 0.0, %v1608
    %1610 = vmatprep.mubr.f32.mxu0 0.0
    %1611 = vmatmul.mubr.f32.gmra.mrb[0].mxu0 %v1460
    %v1612 = vpop.f32.mrb[0].mxu0
    %v1613 = vadd.f32 0.0, %v1612
    %v1614 = vpop.f32.mrb[0].mxu0
    %v1615 = vadd.f32 0.0, %v1614
    %1616 = vmatprep.mubr.f32.mxu0 0.0
    %1617 = vmatmul.mubr.f32.gmra.mrb[0].mxu0 %v1463
    %v1618 = vpop.f32.mrb[0].mxu0
    %v1619 = vadd.f32 0.0, %v1618
    %v1620 = vpop.f32.mrb[0].mxu0
    %v1621 = vadd.f32 0.0, %v1620
    %1622 = vmatprep.mubr.f32.mxu0 0.0
    %1623 = vmatmul.mubr.f32.gmra.mrb[0].mxu0 %v1466
    %v1624 = vpop.f32.mrb[0].mxu0
    %v1625 = vadd.f32 0.0, %v1624
    %v1626 = vpop.f32.mrb[0].mxu0
    %v1627 = vadd.f32 0.0, %v1626
    %1628 = vdwg.mxu0
    %1629 = vmatprep.subr.mxu0 %v1406
    %1630 = vmatpush1.msra.mxu0 %v1405
    %1631 = vmatprep.subr.mxu0 %v1410
    %1632 = vmatpush1.msra.mxu0 %v1409
    %1633 = vmatprep.subr.mxu0 %v1414
    %1634 = vmatpush1.msra.mxu0 %v1413
    %1635 = vmatprep.subr.mxu0 %v1418
    %1636 = vmatpush1.msra.mxu0 %v1417
    %1637 = vmatprep.subr.mxu0 0.0
    %1638 = vmatpush1.msra.mxu0 0.0
    %1639 = vmatprep.subr.mxu0 0.0
    %1640 = vmatpush1.msra.mxu0 0.0
    %1641 = vmatprep.subr.mxu0 0.0
    %1642 = vmatpush1.msra.mxu0 0.0
    %1643 = vmatprep.subr.mxu0 0.0
    %1644 = vmatpush1.msra.mxu0 0.0
    %1645 = vmatprep.subr.mxu0 0.0
    %1646 = vmatpush1.msra.mxu0 0.0
    %1647 = vmatprep.subr.mxu0 0.0
    %1648 = vmatpush1.msra.mxu0 0.0
    %1649 = vmatprep.subr.mxu0 0.0
    %1650 = vmatpush1.msra.mxu0 0.0
    %1651 = vmatprep.subr.mxu0 0.0
    %1652 = vmatpush1.msra.mxu0 0.0
    %1653 = vmatprep.subr.mxu0 0.0
    %1654 = vmatpush1.msra.mxu0 0.0
    %1655 = vmatprep.subr.mxu0 0.0
    %1656 = vmatpush1.msra.mxu0 0.0
    %1657 = vmatprep.subr.mxu0 0.0
    %1658 = vmatpush1.msra.mxu0 0.0
    %1659 = vmatprep.subr.mxu0 0.0
    %1660 = vmatpush1.msra.mxu0 0.0
    %1661 = vmatprep.subr.mxu0 0.0
    %1662 = vmatpush1.msra.mxu0 0.0
    %1663 = vmatprep.subr.mxu0 0.0
    %1664 = vmatpush1.msra.mxu0 0.0
    %1665 = vmatprep.subr.mxu0 0.0
    %1666 = vmatpush1.msra.mxu0 0.0
    %1667 = vmatprep.subr.mxu0 0.0
    %1668 = vmatpush1.msra.mxu0 0.0
    %1669 = vmatprep.subr.mxu0 0.0
    %1670 = vmatpush1.msra.mxu0 0.0
    %1671 = vmatprep.subr.mxu0 0.0
    %1672 = vmatpush1.msra.mxu0 0.0
    %1673 = vmatprep.subr.mxu0 0.0
    %1674 = vmatpush1.msra.mxu0 0.0
    %1675 = vmatprep.subr.mxu0 0.0
    %1676 = vmatpush1.msra.mxu0 0.0
    %1677 = vmatprep.subr.mxu0 0.0
    %1678 = vmatpush1.msra.mxu0 0.0
    %1679 = vmatprep.subr.mxu0 0.0
    %1680 = vmatpush1.msra.mxu0 0.0
    %1681 = vmatprep.subr.mxu0 0.0
    %1682 = vmatpush1.msra.mxu0 0.0
    %1683 = vmatprep.subr.mxu0 0.0
    %1684 = vmatpush1.msra.mxu0 0.0
    %1685 = vmatprep.subr.mxu0 0.0
    %1686 = vmatpush1.msra.mxu0 0.0
    %1687 = vmatprep.subr.mxu0 0.0
    %1688 = vmatpush1.msra.mxu0 0.0
    %1689 = vmatprep.subr.mxu0 0.0
    %1690 = vmatpush1.msra.mxu0 0.0
    %1691 = vmatprep.subr.mxu0 0.0
    %1692 = vmatpush1.msra.mxu0 0.0
    %1693 = vmatprep.mubr.f32.mxu0 0.0
    %1694 = vmatmul.mubr.f32.gmra.mrb[0].mxu0 %v1421
    %v1695 = vpop.f32.mrb[0].mxu0
    %v1696 = vadd.f32 0.0, %v1695
    %v1697 = vpop.f32.mrb[0].mxu0
    %v1698 = vadd.f32 0.0, %v1697
    %1699 = vmatprep.mubr.f32.mxu0 0.0
    %1700 = vmatmul.mubr.f32.gmra.mrb[0].mxu0 %v1424
    %v1701 = vpop.f32.mrb[0].mxu0
    %v1702 = vadd.f32 0.0, %v1701
    %v1703 = vpop.f32.mrb[0].mxu0
    %v1704 = vadd.f32 0.0, %v1703
    %1705 = vmatprep.mubr.f32.mxu0 0.0
    %1706 = vmatmul.mubr.f32.gmra.mrb[0].mxu0 %v1427
    %v1707 = vpop.f32.mrb[0].mxu0
    %v1708 = vadd.f32 0.0, %v1707
    %v1709 = vpop.f32.mrb[0].mxu0
    %v1710 = vadd.f32 0.0, %v1709
    %1711 = vmatprep.mubr.f32.mxu0 0.0
    %1712 = vmatmul.mubr.f32.gmra.mrb[0].mxu0 %v1430
    %v1713 = vpop.f32.mrb[0].mxu0
    %v1714 = vadd.f32 0.0, %v1713
    %v1715 = vpop.f32.mrb[0].mxu0
    %v1716 = vadd.f32 0.0, %v1715
    %1717 = vmatprep.mubr.f32.mxu0 0.0
    %1718 = vmatmul.mubr.f32.gmra.mrb[0].mxu0 %v1433
    %v1719 = vpop.f32.mrb[0].mxu0
    %v1720 = vadd.f32 0.0, %v1719
    %v1721 = vpop.f32.mrb[0].mxu0
    %v1722 = vadd.f32 0.0, %v1721
    %1723 = vmatprep.mubr.f32.mxu0 0.0
    %1724 = vmatmul.mubr.f32.gmra.mrb[0].mxu0 %v1436
    %v1725 = vpop.f32.mrb[0].mxu0
    %v1726 = vadd.f32 0.0, %v1725
    %v1727 = vpop.f32.mrb[0].mxu0
    %v1728 = vadd.f32 0.0, %v1727
    %1729 = vmatprep.mubr.f32.mxu0 0.0
    %1730 = vmatmul.mubr.f32.gmra.mrb[0].mxu0 %v1439
    %v1731 = vpop.f32.mrb[0].mxu0
    %v1732 = vadd.f32 0.0, %v1731
    %v1733 = vpop.f32.mrb[0].mxu0
    %v1734 = vadd.f32 0.0, %v1733
    %1735 = vmatprep.mubr.f32.mxu0 0.0
    %1736 = vmatmul.mubr.f32.gmra.mrb[0].mxu0 %v1442
    %v1737 = vpop.f32.mrb[0].mxu0
    %v1738 = vadd.f32 0.0, %v1737
    %v1739 = vpop.f32.mrb[0].mxu0
    %v1740 = vadd.f32 0.0, %v1739
    %1741 = vmatprep.mubr.f32.mxu0 0.0
    %1742 = vmatmul.mubr.f32.gmra.mrb[0].mxu0 %v1445
    %v1743 = vpop.f32.mrb[0].mxu0
    %v1744 = vadd.f32 0.0, %v1743
    %v1745 = vpop.f32.mrb[0].mxu0
    %v1746 = vadd.f32 0.0, %v1745
    %1747 = vmatprep.mubr.f32.mxu0 0.0
    %1748 = vmatmul.mubr.f32.gmra.mrb[0].mxu0 %v1448
    %v1749 = vpop.f32.mrb[0].mxu0
    %v1750 = vadd.f32 0.0, %v1749
    %v1751 = vpop.f32.mrb[0].mxu0
    %v1752 = vadd.f32 0.0, %v1751
    %1753 = vmatprep.mubr.f32.mxu0 0.0
    %1754 = vmatmul.mubr.f32.gmra.mrb[0].mxu0 %v1451
    %v1755 = vpop.f32.mrb[0].mxu0
    %v1756 = vadd.f32 0.0, %v1755
    %v1757 = vpop.f32.mrb[0].mxu0
    %v1758 = vadd.f32 0.0, %v1757
    %1759 = vmatprep.mubr.f32.mxu0 0.0
    %1760 = vmatmul.mubr.f32.gmra.mrb[0].mxu0 %v1454
    %v1761 = vpop.f32.mrb[0].mxu0
    %v1762 = vadd.f32 0.0, %v1761
    %v1763 = vpop.f32.mrb[0].mxu0
    %v1764 = vadd.f32 0.0, %v1763
    %1765 = vmatprep.mubr.f32.mxu0 0.0
    %1766 = vmatmul.mubr.f32.gmra.mrb[0].mxu0 %v1457
    %v1767 = vpop.f32.mrb[0].mxu0
    %v1768 = vadd.f32 0.0, %v1767
    %v1769 = vpop.f32.mrb[0].mxu0
    %v1770 = vadd.f32 0.0, %v1769
    %1771 = vmatprep.mubr.f32.mxu0 0.0
    %1772 = vmatmul.mubr.f32.gmra.mrb[0].mxu0 %v1460
    %v1773 = vpop.f32.mrb[0].mxu0
    %v1774 = vadd.f32 0.0, %v1773
    %v1775 = vpop.f32.mrb[0].mxu0
    %v1776 = vadd.f32 0.0, %v1775
    %1777 = vmatprep.mubr.f32.mxu0 0.0
    %1778 = vmatmul.mubr.f32.gmra.mrb[0].mxu0 %v1463
    %v1779 = vpop.f32.mrb[0].mxu0
    %v1780 = vadd.f32 0.0, %v1779
    %v1781 = vpop.f32.mrb[0].mxu0
    %v1782 = vadd.f32 0.0, %v1781
    %1783 = vmatprep.mubr.f32.mxu0 0.0
    %1784 = vmatmul.mubr.f32.gmra.mrb[0].mxu0 %v1466
    %v1785 = vpop.f32.mrb[0].mxu0
    %v1786 = vadd.f32 0.0, %v1785
    %v1787 = vpop.f32.mrb[0].mxu0
    %v1788 = vadd.f32 0.0, %v1787
    %1789 = vdwg.mxu0
    %v1790 = vmul.f32 %v511, %v1535
    %v1791 = vmul.f32 %v513, %v1537
    %v1792 = vmul.f32 %v672, %v1696
    %v1793 = vmul.f32 %v674, %v1698
    %v1794 = vmul.f32 %v517, %v1541
    %v1795 = vmul.f32 %v519, %v1543
    %v1796 = vmul.f32 %v678, %v1702
    %v1797 = vmul.f32 %v680, %v1704
    %v1798 = vmul.f32 %v523, %v1547
    %v1799 = vmul.f32 %v525, %v1549
    %v1800 = vmul.f32 %v684, %v1708
    %v1801 = vmul.f32 %v686, %v1710
    %v1802 = vmul.f32 %v529, %v1553
    %v1803 = vmul.f32 %v531, %v1555
    %v1804 = vmul.f32 %v690, %v1714
    %v1805 = vmul.f32 %v692, %v1716
    %v1806 = vmul.f32 %v535, %v1559
    %v1807 = vmul.f32 %v537, %v1561
    %v1808 = vmul.f32 %v696, %v1720
    %v1809 = vmul.f32 %v698, %v1722
    %v1810 = vmul.f32 %v541, %v1565
    %v1811 = vmul.f32 %v543, %v1567
    %v1812 = vmul.f32 %v702, %v1726
    %v1813 = vmul.f32 %v704, %v1728
    %v1814 = vmul.f32 %v547, %v1571
    %v1815 = vmul.f32 %v549, %v1573
    %v1816 = vmul.f32 %v708, %v1732
    %v1817 = vmul.f32 %v710, %v1734
    %v1818 = vmul.f32 %v553, %v1577
    %v1819 = vmul.f32 %v555, %v1579
    %v1820 = vmul.f32 %v714, %v1738
    %v1821 = vmul.f32 %v716, %v1740
    %v1822 = vmul.f32 %v559, %v1583
    %v1823 = vmul.f32 %v561, %v1585
    %v1824 = vmul.f32 %v720, %v1744
    %v1825 = vmul.f32 %v722, %v1746
    %v1826 = vmul.f32 %v565, %v1589
    %v1827 = vmul.f32 %v567, %v1591
    %v1828 = vmul.f32 %v726, %v1750
    %v1829 = vmul.f32 %v728, %v1752
    %v1830 = vmul.f32 %v571, %v1595
    %v1831 = vmul.f32 %v573, %v1597
    %v1832 = vmul.f32 %v732, %v1756
    %v1833 = vmul.f32 %v734, %v1758
    %v1834 = vmul.f32 %v577, %v1601
    %v1835 = vmul.f32 %v579, %v1603
    %v1836 = vmul.f32 %v738, %v1762
    %v1837 = vmul.f32 %v740, %v1764
    %v1838 = vmul.f32 %v583, %v1607
    %v1839 = vmul.f32 %v585, %v1609
    %v1840 = vmul.f32 %v744, %v1768
    %v1841 = vmul.f32 %v746, %v1770
    %v1842 = vmul.f32 %v589, %v1613
    %v1843 = vmul.f32 %v591, %v1615
    %v1844 = vmul.f32 %v750, %v1774
    %v1845 = vmul.f32 %v752, %v1776
    %v1846 = vmul.f32 %v595, %v1619
    %v1847 = vmul.f32 %v597, %v1621
    %v1848 = vmul.f32 %v756, %v1780
    %v1849 = vmul.f32 %v758, %v1782
    %v1850 = vmul.f32 %v601, %v1625
    %v1851 = vmul.f32 %v603, %v1627
    %v1852 = vmul.f32 %v762, %v1786
    %v1853 = vmul.f32 %v764, %v1788
    %v1854 = vld [vmem:[%s6] sm:$0xff]
    %v1855 = vld [vmem:[%s6 + $0x8] sm:$0xff]
    %1856 = vmatprep.subr.mxu0 %v1791
    %1857 = vmatpush1.msra.mxu0 %v1790
    %1858 = vmatprep.subr.mxu0 %v1795
    %1859 = vmatpush1.msra.mxu0 %v1794
    %1860 = vmatprep.subr.mxu0 %v1799
    %1861 = vmatpush1.msra.mxu0 %v1798
    %1862 = vmatprep.subr.mxu0 %v1803
    %1863 = vmatpush1.msra.mxu0 %v1802
    %1864 = vmatprep.subr.mxu0 %v1807
    %1865 = vmatpush1.msra.mxu0 %v1806
    %1866 = vmatprep.subr.mxu0 %v1811
    %1867 = vmatpush1.msra.mxu0 %v1810
    %1868 = vmatprep.subr.mxu0 %v1815
    %1869 = vmatpush1.msra.mxu0 %v1814
    %1870 = vmatprep.subr.mxu0 %v1819
    %1871 = vmatpush1.msra.mxu0 %v1818
    %1872 = vmatprep.subr.mxu0 %v1823
    %1873 = vmatpush1.msra.mxu0 %v1822
    %1874 = vmatprep.subr.mxu0 %v1827
    %1875 = vmatpush1.msra.mxu0 %v1826
    %1876 = vmatprep.subr.mxu0 %v1831
    %1877 = vmatpush1.msra.mxu0 %v1830
    %1878 = vmatprep.subr.mxu0 %v1835
    %1879 = vmatpush1.msra.mxu0 %v1834
    %1880 = vmatprep.subr.mxu0 %v1839
    %1881 = vmatpush1.msra.mxu0 %v1838
    %1882 = vmatprep.subr.mxu0 %v1843
    %1883 = vmatpush1.msra.mxu0 %v1842
    %1884 = vmatprep.subr.mxu0 %v1847
    %1885 = vmatpush1.msra.mxu0 %v1846
    %1886 = vmatprep.subr.mxu0 %v1851
    %1887 = vmatpush1.msra.mxu0 %v1850
    %1888 = vmatprep.subr.mxu0 0.0
    %1889 = vmatpush1.msra.mxu0 0.0
    %1890 = vmatprep.subr.mxu0 0.0
    %1891 = vmatpush1.msra.mxu0 0.0
    %1892 = vmatprep.subr.mxu0 0.0
    %1893 = vmatpush1.msra.mxu0 0.0
    %1894 = vmatprep.subr.mxu0 0.0
    %1895 = vmatpush1.msra.mxu0 0.0
    %1896 = vmatprep.subr.mxu0 0.0
    %1897 = vmatpush1.msra.mxu0 0.0
    %1898 = vmatprep.subr.mxu0 0.0
    %1899 = vmatpush1.msra.mxu0 0.0
    %1900 = vmatprep.subr.mxu0 0.0
    %1901 = vmatpush1.msra.mxu0 0.0
    %1902 = vmatprep.subr.mxu0 0.0
    %1903 = vmatpush1.msra.mxu0 0.0
    %1904 = vmatprep.subr.mxu0 0.0
    %1905 = vmatpush1.msra.mxu0 0.0
    %1906 = vmatprep.subr.mxu0 0.0
    %1907 = vmatpush1.msra.mxu0 0.0
    %1908 = vmatprep.subr.mxu0 0.0
    %1909 = vmatpush1.msra.mxu0 0.0
    %1910 = vmatprep.subr.mxu0 0.0
    %1911 = vmatpush1.msra.mxu0 0.0
    %1912 = vmatprep.subr.mxu0 0.0
    %1913 = vmatpush1.msra.mxu0 0.0
    %1914 = vmatprep.subr.mxu0 0.0
    %1915 = vmatpush1.msra.mxu0 0.0
    %1916 = vmatprep.subr.mxu0 0.0
    %1917 = vmatpush1.msra.mxu0 0.0
    %1918 = vmatprep.subr.mxu0 0.0
    %1919 = vmatpush1.msra.mxu0 0.0
    %1920 = vmatprep.mubr.f32.mxu0 0.0
    %1921 = vmatmul.mubr.f32.gmra.mrb[0].mxu0 %v1854
    %v1922 = vpop.f32.mrb[0].mxu0
    %v1923 = vadd.f32 0.0, %v1922
    %v1924 = vpop.f32.mrb[0].mxu0
    %v1925 = vadd.f32 0.0, %v1924
    %1926 = vmatprep.mubr.f32.mxu0 0.0
    %1927 = vmatmul.mubr.f32.gmra.mrb[0].mxu0 %v1855
    %v1928 = vpop.f32.mrb[0].mxu0
    %v1929 = vadd.f32 0.0, %v1928
    %v1930 = vpop.f32.mrb[0].mxu0
    %v1931 = vadd.f32 0.0, %v1930
    %1932 = vdwg.mxu0
    %1933 = vmatprep.subr.mxu0 %v1793
    %1934 = vmatpush1.msra.mxu0 %v1792
    %1935 = vmatprep.subr.mxu0 %v1797
    %1936 = vmatpush1.msra.mxu0 %v1796
    %1937 = vmatprep.subr.mxu0 %v1801
    %1938 = vmatpush1.msra.mxu0 %v1800
    %1939 = vmatprep.subr.mxu0 %v1805
    %1940 = vmatpush1.msra.mxu0 %v1804
    %1941 = vmatprep.subr.mxu0 %v1809
    %1942 = vmatpush1.msra.mxu0 %v1808
    %1943 = vmatprep.subr.mxu0 %v1813
    %1944 = vmatpush1.msra.mxu0 %v1812
    %1945 = vmatprep.subr.mxu0 %v1817
    %1946 = vmatpush1.msra.mxu0 %v1816
    %1947 = vmatprep.subr.mxu0 %v1821
    %1948 = vmatpush1.msra.mxu0 %v1820
    %1949 = vmatprep.subr.mxu0 %v1825
    %1950 = vmatpush1.msra.mxu0 %v1824
    %1951 = vmatprep.subr.mxu0 %v1829
    %1952 = vmatpush1.msra.mxu0 %v1828
    %1953 = vmatprep.subr.mxu0 %v1833
    %1954 = vmatpush1.msra.mxu0 %v1832
    %1955 = vmatprep.subr.mxu0 %v1837
    %1956 = vmatpush1.msra.mxu0 %v1836
    %1957 = vmatprep.subr.mxu0 %v1841
    %1958 = vmatpush1.msra.mxu0 %v1840
    %1959 = vmatprep.subr.mxu0 %v1845
    %1960 = vmatpush1.msra.mxu0 %v1844
    %1961 = vmatprep.subr.mxu0 %v1849
    %1962 = vmatpush1.msra.mxu0 %v1848
    %1963 = vmatprep.subr.mxu0 %v1853
    %1964 = vmatpush1.msra.mxu0 %v1852
    %1965 = vmatprep.subr.mxu0 0.0
    %1966 = vmatpush1.msra.mxu0 0.0
    %1967 = vmatprep.subr.mxu0 0.0
    %1968 = vmatpush1.msra.mxu0 0.0
    %1969 = vmatprep.subr.mxu0 0.0
    %1970 = vmatpush1.msra.mxu0 0.0
    %1971 = vmatprep.subr.mxu0 0.0
    %1972 = vmatpush1.msra.mxu0 0.0
    %1973 = vmatprep.subr.mxu0 0.0
    %1974 = vmatpush1.msra.mxu0 0.0
    %1975 = vmatprep.subr.mxu0 0.0
    %1976 = vmatpush1.msra.mxu0 0.0
    %1977 = vmatprep.subr.mxu0 0.0
    %1978 = vmatpush1.msra.mxu0 0.0
    %1979 = vmatprep.subr.mxu0 0.0
    %1980 = vmatpush1.msra.mxu0 0.0
    %1981 = vmatprep.subr.mxu0 0.0
    %1982 = vmatpush1.msra.mxu0 0.0
    %1983 = vmatprep.subr.mxu0 0.0
    %1984 = vmatpush1.msra.mxu0 0.0
    %1985 = vmatprep.subr.mxu0 0.0
    %1986 = vmatpush1.msra.mxu0 0.0
    %1987 = vmatprep.subr.mxu0 0.0
    %1988 = vmatpush1.msra.mxu0 0.0
    %1989 = vmatprep.subr.mxu0 0.0
    %1990 = vmatpush1.msra.mxu0 0.0
    %1991 = vmatprep.subr.mxu0 0.0
    %1992 = vmatpush1.msra.mxu0 0.0
    %1993 = vmatprep.subr.mxu0 0.0
    %1994 = vmatpush1.msra.mxu0 0.0
    %1995 = vmatprep.subr.mxu0 0.0
    %1996 = vmatpush1.msra.mxu0 0.0
    %1997 = vmatprep.mubr.f32.mxu0 0.0
    %1998 = vmatmul.mubr.f32.gmra.mrb[0].mxu0 %v1854
    %v1999 = vpop.f32.mrb[0].mxu0
    %v2000 = vadd.f32 0.0, %v1999
    %v2001 = vpop.f32.mrb[0].mxu0
    %v2002 = vadd.f32 0.0, %v2001
    %2003 = vmatprep.mubr.f32.mxu0 0.0
    %2004 = vmatmul.mubr.f32.gmra.mrb[0].mxu0 %v1855
    %v2005 = vpop.f32.mrb[0].mxu0
    %v2006 = vadd.f32 0.0, %v2005
    %v2007 = vpop.f32.mrb[0].mxu0
    %v2008 = vadd.f32 0.0, %v2007
    %2009 = vdwg.mxu0
    %v2010 = vld [vmem:[%s10] sm:$0xff]
    %v2011 = vld [vmem:[%s10 + $0x8] sm:$0xff]
    %v2012 = vld [vmem:[%s10 + $0x10] sm:$0xff]
    %v2013 = vld [vmem:[%s10 + $0x18] sm:$0xff]
    %v2014 = vld [vmem:[%s10 + $0x20] sm:$0xff]
    %v2015 = vld [vmem:[%s10 + $0x28] sm:$0xff]
    %v2016 = vld [vmem:[%s10 + $0x30] sm:$0xff]
    %v2017 = vld [vmem:[%s10 + $0x38] sm:$0xff]
    %v2018 = vld [vmem:[%s10 + $0x40] sm:$0xff]
    %v2019 = vld [vmem:[%s10 + $0x48] sm:$0xff]
    %v2020 = vld [vmem:[%s10 + $0x50] sm:$0xff]
    %v2021 = vld [vmem:[%s10 + $0x58] sm:$0xff]
    %v2022 = vld [vmem:[%s10 + $0x60] sm:$0xff]
    %v2023 = vld [vmem:[%s10 + $0x68] sm:$0xff]
    %v2024 = vld [vmem:[%s10 + $0x70] sm:$0xff]
    %v2025 = vld [vmem:[%s10 + $0x78] sm:$0xff]
    %v2026 = vld [vmem:[%s10 + $0x80] sm:$0xff]
    %v2027 = vld [vmem:[%s10 + $0x88] sm:$0xff]
    %v2028 = vld [vmem:[%s10 + $0x90] sm:$0xff]
    %v2029 = vld [vmem:[%s10 + $0x98] sm:$0xff]
    %v2030 = vld [vmem:[%s10 + $0xa0] sm:$0xff]
    %v2031 = vld [vmem:[%s10 + $0xa8] sm:$0xff]
    %v2032 = vld [vmem:[%s10 + $0xb0] sm:$0xff]
    %v2033 = vld [vmem:[%s10 + $0xb8] sm:$0xff]
    %v2034 = vld [vmem:[%s10 + $0xc0] sm:$0xff]
    %v2035 = vld [vmem:[%s10 + $0xc8] sm:$0xff]
    %v2036 = vld [vmem:[%s10 + $0xd0] sm:$0xff]
    %v2037 = vld [vmem:[%s10 + $0xd8] sm:$0xff]
    %v2038 = vld [vmem:[%s10 + $0xe0] sm:$0xff]
    %v2039 = vld [vmem:[%s10 + $0xe8] sm:$0xff]
    %v2040 = vld [vmem:[%s10 + $0xf0] sm:$0xff]
    %v2041 = vld [vmem:[%s10 + $0xf8] sm:$0xff]
    %v2042 = vld [vmem:[%s10 + $0x100] sm:$0xff]
    %v2043 = vld [vmem:[%s10 + $0x108] sm:$0xff]
    %v2044 = vld [vmem:[%s10 + $0x110] sm:$0xff]
    %v2045 = vld [vmem:[%s10 + $0x118] sm:$0xff]
    %v2046 = vld [vmem:[%s10 + $0x120] sm:$0xff]
    %v2047 = vld [vmem:[%s10 + $0x128] sm:$0xff]
    %v2048 = vld [vmem:[%s10 + $0x130] sm:$0xff]
    %v2049 = vld [vmem:[%s10 + $0x138] sm:$0xff]
    %v2050 = vld [vmem:[%s10 + $0x140] sm:$0xff]
    %v2051 = vld [vmem:[%s10 + $0x148] sm:$0xff]
    %v2052 = vld [vmem:[%s10 + $0x150] sm:$0xff]
    %v2053 = vld [vmem:[%s10 + $0x158] sm:$0xff]
    %v2054 = vld [vmem:[%s10 + $0x160] sm:$0xff]
    %v2055 = vld [vmem:[%s10 + $0x168] sm:$0xff]
    %v2056 = vld [vmem:[%s10 + $0x170] sm:$0xff]
    %v2057 = vld [vmem:[%s10 + $0x178] sm:$0xff]
    %v2058 = vld [vmem:[%s10 + $0x180] sm:$0xff]
    %v2059 = vld [vmem:[%s10 + $0x188] sm:$0xff]
    %v2060 = vld [vmem:[%s10 + $0x190] sm:$0xff]
    %v2061 = vld [vmem:[%s10 + $0x198] sm:$0xff]
    %v2062 = vld [vmem:[%s10 + $0x1a0] sm:$0xff]
    %v2063 = vld [vmem:[%s10 + $0x1a8] sm:$0xff]
    %v2064 = vld [vmem:[%s10 + $0x1b0] sm:$0xff]
    %v2065 = vld [vmem:[%s10 + $0x1b8] sm:$0xff]
    %v2066 = vld [vmem:[%s10 + $0x1c0] sm:$0xff]
    %v2067 = vld [vmem:[%s10 + $0x1c8] sm:$0xff]
    %v2068 = vld [vmem:[%s10 + $0x1d0] sm:$0xff]
    %v2069 = vld [vmem:[%s10 + $0x1d8] sm:$0xff]
    %v2070 = vld [vmem:[%s10 + $0x1e0] sm:$0xff]
    %v2071 = vld [vmem:[%s10 + $0x1e8] sm:$0xff]
    %v2072 = vld [vmem:[%s10 + $0x1f0] sm:$0xff]
    %v2073 = vld [vmem:[%s10 + $0x1f8] sm:$0xff]
    %2074 = vmatprep.subr.mxu0 0.0
    %2075 = vmatpush1.msra.mxu0 %v2010
    %2076 = vmatprep.subr.mxu0 0.0
    %2077 = vmatpush1.msra.mxu0 %v2011
    %2078 = vmatprep.subr.mxu0 0.0
    %2079 = vmatpush1.msra.mxu0 %v2012
    %2080 = vmatprep.subr.mxu0 0.0
    %2081 = vmatpush1.msra.mxu0 %v2013
    %2082 = vmatprep.subr.mxu0 0.0
    %2083 = vmatpush1.msra.mxu0 %v2014
    %2084 = vmatprep.subr.mxu0 0.0
    %2085 = vmatpush1.msra.mxu0 %v2015
    %2086 = vmatprep.subr.mxu0 0.0
    %2087 = vmatpush1.msra.mxu0 %v2016
    %2088 = vmatprep.subr.mxu0 0.0
    %2089 = vmatpush1.msra.mxu0 %v2017
    %2090 = vmatprep.subr.mxu0 0.0
    %2091 = vmatpush1.msra.mxu0 %v2018
    %2092 = vmatprep.subr.mxu0 0.0
    %2093 = vmatpush1.msra.mxu0 %v2019
    %2094 = vmatprep.subr.mxu0 0.0
    %2095 = vmatpush1.msra.mxu0 %v2020
    %2096 = vmatprep.subr.mxu0 0.0
    %2097 = vmatpush1.msra.mxu0 %v2021
    %2098 = vmatprep.subr.mxu0 0.0
    %2099 = vmatpush1.msra.mxu0 %v2022
    %2100 = vmatprep.subr.mxu0 0.0
    %2101 = vmatpush1.msra.mxu0 %v2023
    %2102 = vmatprep.subr.mxu0 0.0
    %2103 = vmatpush1.msra.mxu0 %v2024
    %2104 = vmatprep.subr.mxu0 0.0
    %2105 = vmatpush1.msra.mxu0 %v2025
    %2106 = vmatprep.subr.mxu0 0.0
    %2107 = vmatpush1.msra.mxu0 %v2026
    %2108 = vmatprep.subr.mxu0 0.0
    %2109 = vmatpush1.msra.mxu0 %v2027
    %2110 = vmatprep.subr.mxu0 0.0
    %2111 = vmatpush1.msra.mxu0 %v2028
    %2112 = vmatprep.subr.mxu0 0.0
    %2113 = vmatpush1.msra.mxu0 %v2029
    %2114 = vmatprep.subr.mxu0 0.0
    %2115 = vmatpush1.msra.mxu0 %v2030
    %2116 = vmatprep.subr.mxu0 0.0
    %2117 = vmatpush1.msra.mxu0 %v2031
    %2118 = vmatprep.subr.mxu0 0.0
    %2119 = vmatpush1.msra.mxu0 %v2032
    %2120 = vmatprep.subr.mxu0 0.0
    %2121 = vmatpush1.msra.mxu0 %v2033
    %2122 = vmatprep.subr.mxu0 0.0
    %2123 = vmatpush1.msra.mxu0 %v2034
    %2124 = vmatprep.subr.mxu0 0.0
    %2125 = vmatpush1.msra.mxu0 %v2035
    %2126 = vmatprep.subr.mxu0 0.0
    %2127 = vmatpush1.msra.mxu0 %v2036
    %2128 = vmatprep.subr.mxu0 0.0
    %2129 = vmatpush1.msra.mxu0 %v2037
    %2130 = vmatprep.subr.mxu0 0.0
    %2131 = vmatpush1.msra.mxu0 %v2038
    %2132 = vmatprep.subr.mxu0 0.0
    %2133 = vmatpush1.msra.mxu0 %v2039
    %2134 = vmatprep.subr.mxu0 0.0
    %2135 = vmatpush1.msra.mxu0 %v2040
    %2136 = vmatprep.subr.mxu0 0.0
    %2137 = vmatpush1.msra.mxu0 %v2041
    %2138 = vmatprep.mubr.f32.mxu0 %v1925
    %2139 = vmatmul.mubr.f32.gmra.mrb[0].mxu0 %v1923
    %v2140 = vpop.f32.mrb[0].mxu0
    %v2141 = vadd.f32 0.0, %v2140
    %v2142 = vpop.f32.mrb[0].mxu0
    %2143 = vmatprep.mubr.f32.mxu0 %v1931
    %2144 = vmatmul.mubr.f32.gmra.mrb[0].mxu0 %v1929
    %v2145 = vpop.f32.mrb[0].mxu0
    %v2146 = vadd.f32 0.0, %v2145
    %v2147 = vpop.f32.mrb[0].mxu0
    %2148 = vdwg.mxu0
    %2149 = vmatprep.subr.mxu0 0.0
    %2150 = vmatpush1.msra.mxu0 %v2042
    %2151 = vmatprep.subr.mxu0 0.0
    %2152 = vmatpush1.msra.mxu0 %v2043
    %2153 = vmatprep.subr.mxu0 0.0
    %2154 = vmatpush1.msra.mxu0 %v2044
    %2155 = vmatprep.subr.mxu0 0.0
    %2156 = vmatpush1.msra.mxu0 %v2045
    %2157 = vmatprep.subr.mxu0 0.0
    %2158 = vmatpush1.msra.mxu0 %v2046
    %2159 = vmatprep.subr.mxu0 0.0
    %2160 = vmatpush1.msra.mxu0 %v2047
    %2161 = vmatprep.subr.mxu0 0.0
    %2162 = vmatpush1.msra.mxu0 %v2048
    %2163 = vmatprep.subr.mxu0 0.0
    %2164 = vmatpush1.msra.mxu0 %v2049
    %2165 = vmatprep.subr.mxu0 0.0
    %2166 = vmatpush1.msra.mxu0 %v2050
    %2167 = vmatprep.subr.mxu0 0.0
    %2168 = vmatpush1.msra.mxu0 %v2051
    %2169 = vmatprep.subr.mxu0 0.0
    %2170 = vmatpush1.msra.mxu0 %v2052
    %2171 = vmatprep.subr.mxu0 0.0
    %2172 = vmatpush1.msra.mxu0 %v2053
    %2173 = vmatprep.subr.mxu0 0.0
    %2174 = vmatpush1.msra.mxu0 %v2054
    %2175 = vmatprep.subr.mxu0 0.0
    %2176 = vmatpush1.msra.mxu0 %v2055
    %2177 = vmatprep.subr.mxu0 0.0
    %2178 = vmatpush1.msra.mxu0 %v2056
    %2179 = vmatprep.subr.mxu0 0.0
    %2180 = vmatpush1.msra.mxu0 %v2057
    %2181 = vmatprep.subr.mxu0 0.0
    %2182 = vmatpush1.msra.mxu0 %v2058
    %2183 = vmatprep.subr.mxu0 0.0
    %2184 = vmatpush1.msra.mxu0 %v2059
    %2185 = vmatprep.subr.mxu0 0.0
    %2186 = vmatpush1.msra.mxu0 %v2060
    %2187 = vmatprep.subr.mxu0 0.0
    %2188 = vmatpush1.msra.mxu0 %v2061
    %2189 = vmatprep.subr.mxu0 0.0
    %2190 = vmatpush1.msra.mxu0 %v2062
    %2191 = vmatprep.subr.mxu0 0.0
    %2192 = vmatpush1.msra.mxu0 %v2063
    %2193 = vmatprep.subr.mxu0 0.0
    %2194 = vmatpush1.msra.mxu0 %v2064
    %2195 = vmatprep.subr.mxu0 0.0
    %2196 = vmatpush1.msra.mxu0 %v2065
    %2197 = vmatprep.subr.mxu0 0.0
    %2198 = vmatpush1.msra.mxu0 %v2066
    %2199 = vmatprep.subr.mxu0 0.0
    %2200 = vmatpush1.msra.mxu0 %v2067
    %2201 = vmatprep.subr.mxu0 0.0
    %2202 = vmatpush1.msra.mxu0 %v2068
    %2203 = vmatprep.subr.mxu0 0.0
    %2204 = vmatpush1.msra.mxu0 %v2069
    %2205 = vmatprep.subr.mxu0 0.0
    %2206 = vmatpush1.msra.mxu0 %v2070
    %2207 = vmatprep.subr.mxu0 0.0
    %2208 = vmatpush1.msra.mxu0 %v2071
    %2209 = vmatprep.subr.mxu0 0.0
    %2210 = vmatpush1.msra.mxu0 %v2072
    %2211 = vmatprep.subr.mxu0 0.0
    %2212 = vmatpush1.msra.mxu0 %v2073
    %2213 = vmatprep.mubr.f32.mxu0 %v2002
    %2214 = vmatmul.mubr.f32.gmra.mrb[0].mxu0 %v2000
    %v2215 = vpop.f32.mrb[0].mxu0
    %v2216 = vadd.f32 %v2141, %v2215
    %v2217 = vpop.f32.mrb[0].mxu0
    %2218 = vmatprep.mubr.f32.mxu0 %v2008
    %2219 = vmatmul.mubr.f32.gmra.mrb[0].mxu0 %v2006
    %v2220 = vpop.f32.mrb[0].mxu0
    %v2221 = vadd.f32 %v2146, %v2220
    %v2222 = vpop.f32.mrb[0].mxu0
    %2223 = vdwg.mxu0
    %2224 = vst.msk [vmem:[#allocation2] sm:$0xff] %vm57, %v2216
    %2225 = vst.msk [vmem:[#allocation2 + $0x8] sm:$0xff] %vm57, %v2221
    // Predicated region
    $region46: #{tpu_custom_call.1} parent=1 // pred_check
      _
    $region47: #{tpu_custom_call.1} parent=1 // pred_check_branch
      %2227 = sbr.rel (0) target = $region49
    $region48: #{tpu_custom_call.1} parent=1 // pred_region
      %s2229 = ssub.s32 256, 256
      %2230 = vsyncadd [#allocation3], %s2229
      %s2231 = sshll.u32 [#allocation2], 4
      %s2232 = int_to_ptr.vmem [resolvable:$true] %s2231
      %2237 = dma.vmem_to_hbm [thread:$0]  %s2232, 256, %s11, [#allocation3], 128, 128, 8
    $region49: #{tpu_custom_call.1} parent=1 // pred_fallthru
      _
    // Predicated region
    $region50: #{tpu_custom_call.1} parent=1 // pred_check
      _
    $region51: #{tpu_custom_call.1} parent=1 // pred_check_branch
      %2239 = sbr.rel (0) target = $region53
    $region52: #{tpu_custom_call.1} parent=1 // pred_region
      %2240 = dma.done [#allocation3], 256
    $region53: #{tpu_custom_call.1} parent=1 // pred_fallthru
      _
    %2241 = vsyncpa [#allocation3], 1

</llo_original>
